<compile_context>
chip_gen: v5e
topology: v5e:2x2
jax: 0.10.0
libtpu: 0.0.40
codegen_flags: <defaults>
</compile_context>

<pallas_src>
import math
import functools

import jax
import jax.numpy as jnp
from jax import lax
from jax.experimental import pallas as pl
from jax.experimental.pallas import tpu as pltpu


# ----------------------------------------------------------------------------
# Small helpers
# ----------------------------------------------------------------------------
def _round_up(x, m):
    return ((x + m - 1) // m) * m


def _pad2d(a, rows, cols):
    r, c = a.shape
    if r == rows and c == cols:
        return a
    return jnp.pad(a, ((0, rows - r), (0, cols - c)))


# ----------------------------------------------------------------------------
# Pallas kernels
# ----------------------------------------------------------------------------
def linear_kernel(x_ref, w_ref, b_ref, o_ref, acc_ref, *, activation):
    # grid = (M/tm, N/tn, K/tk); K is the (last, "arbitrary") reduction axis.
    @pl.when(pl.program_id(2) == 0)
    def _():
        acc_ref[...] = jnp.zeros_like(acc_ref)

    acc_ref[...] += jnp.dot(x_ref[...], w_ref[...],
                            preferred_element_type=jnp.float32)

    @pl.when(pl.program_id(2) == pl.num_programs(2) - 1)
    def _():
        y = acc_ref[...] + b_ref[...]
        if activation == "relu":
            y = jnp.maximum(y, 0.0)
        o_ref[...] = y.astype(o_ref.dtype)


def add_layernorm_kernel(x_ref, r_ref, g_ref, b_ref, o_ref):
    # LayerNorm(x + residual); eps=1e-12, biased variance (matches the module).
    x = x_ref[...] + r_ref[...]
    mean = jnp.mean(x, axis=-1, keepdims=True)
    xc = x - mean
    var = jnp.mean(xc * xc, axis=-1, keepdims=True)
    inv = lax.rsqrt(var + 1e-12)
    o_ref[...] = (xc * inv * g_ref[...] + b_ref[...]).astype(o_ref.dtype)


def mha_attention_kernel(q_ref, k_ref, v_ref, bias_ref, o_ref, *, n_head, scale):
    # blocks: q (1,Sq,D), k/v (1,Sk,D), bias (1,Sq,Sk) f32 additive mask.
    q = q_ref[0]
    k = k_ref[0]
    v = v_ref[0]
    bias = bias_ref[0]
    d_model = q.shape[-1]
    dk = d_model // n_head
    outs = []
    for h in range(n_head):          # static unroll over heads
        sl = slice(h * dk, (h + 1) * dk)
        qh = q[:, sl]
        kh = k[:, sl]
        vh = v[:, sl]
        # contract last dims -> no K transpose materialized
        s = lax.dot_general(qh, kh, (((1,), (1,)), ((), ())),
                            preferred_element_type=jnp.float32)
        s = s * scale + bias
        s = s - jnp.max(s, axis=-1, keepdims=True)
        p = jnp.exp(s)
        p = p * pl.reciprocal(jnp.sum(p, axis=-1, keepdims=True), approx=True)
        outs.append(jnp.dot(p, vh, preferred_element_type=jnp.float32))
    o_ref[0] = jnp.concatenate(outs, axis=-1).astype(o_ref.dtype)


# ----------------------------------------------------------------------------
# Pallas wrappers
# ----------------------------------------------------------------------------
def pl_linear(x, w, b, activation=None, *, tm_max=256, tn_max=512, tk_max=512):
    """Tiled, pipelined y = act(x @ w + b).  Pads to tile multiples and crops."""
    M, K = x.shape
    N = w.shape[1]

    Mp = _round_up(M, 8)
    Kp = _round_up(K, 128)
    Np = _round_up(N, 128)
    tm = min(tm_max, Mp)
    tk = min(tk_max, Kp)
    tn = min(tn_max, Np)
    Mp = _round_up(Mp, tm)
    Kp = _round_up(Kp, tk)
    Np = _round_up(Np, tn)

    xp = _pad2d(x, Mp, Kp)
    wp = _pad2d(w, Kp, Np)
    bp = _pad2d(b.reshape(1, N), 1, Np)

    kern = functools.partial(linear_kernel, activation=activation)
    out = pl.pallas_call(
        kern,
        out_shape=jax.ShapeDtypeStruct((Mp, Np), jnp.float32),
        grid=(Mp // tm, Np // tn, Kp // tk),
        in_specs=[
            pl.BlockSpec((tm, tk), lambda i, j, k: (i, k)),
            pl.BlockSpec((tk, tn), lambda i, j, k: (k, j)),
            pl.BlockSpec((1, tn), lambda i, j, k: (0, j)),
        ],
        out_specs=pl.BlockSpec((tm, tn), lambda i, j, k: (i, j)),
        scratch_shapes=[pltpu.VMEM((tm, tn), jnp.float32)],
        compiler_params=pltpu.CompilerParams(
            dimension_semantics=("parallel", "parallel", "arbitrary"),
            vmem_limit_bytes=32 * 1024 * 1024,
        ),
    )(xp, wp, bp)
    return out[:M, :N]


def pl_add_layernorm(x, res, gamma, beta, *, tm_max=256):
    """LayerNorm(x + res) over rows, row-tiled."""
    M, D = x.shape
    Mp = _round_up(M, 8)
    tm = min(tm_max, Mp)
    Mp = _round_up(Mp, tm)
    xp = _pad2d(x, Mp, D)
    rp = _pad2d(res, Mp, D)
    out = pl.pallas_call(
        add_layernorm_kernel,
        out_shape=jax.ShapeDtypeStruct((Mp, D), jnp.float32),
        grid=(Mp // tm,),
        in_specs=[
            pl.BlockSpec((tm, D), lambda i: (i, 0)),
            pl.BlockSpec((tm, D), lambda i: (i, 0)),
            pl.BlockSpec((1, D), lambda i: (0, 0)),
            pl.BlockSpec((1, D), lambda i: (0, 0)),
        ],
        out_specs=pl.BlockSpec((tm, D), lambda i: (i, 0)),
        compiler_params=pltpu.CompilerParams(
            dimension_semantics=("parallel",)),
    )(xp, rp, gamma.reshape(1, D), beta.reshape(1, D))
    return out[:M]


def pl_attention(q, k, v, bias, n_head):
    # q: (B,Sq,D), k/v: (B,Sk,D), bias: (B,Sq,Sk) f32 additive mask.
    B, Sq, D = q.shape
    Sk = k.shape[1]
    scale = 1.0 / math.sqrt(D // n_head)
    kern = functools.partial(mha_attention_kernel, n_head=n_head, scale=scale)
    return pl.pallas_call(
        kern,
        out_shape=jax.ShapeDtypeStruct((B, Sq, D), jnp.float32),
        grid=(B,),
        in_specs=[
            pl.BlockSpec((1, Sq, D), lambda b: (b, 0, 0)),
            pl.BlockSpec((1, Sk, D), lambda b: (b, 0, 0)),
            pl.BlockSpec((1, Sk, D), lambda b: (b, 0, 0)),
            pl.BlockSpec((1, Sq, Sk), lambda b: (b, 0, 0)),
        ],
        out_specs=pl.BlockSpec((1, Sq, D), lambda b: (b, 0, 0)),
        compiler_params=pltpu.CompilerParams(
            dimension_semantics=("parallel",)),
    )(q, k, v, bias)


# ----------------------------------------------------------------------------
# Model pieces (plain-JAX glue around the Pallas kernels)
# ----------------------------------------------------------------------------
def sinusoid_encoding(max_len, d_model):
    pos = jnp.arange(max_len, dtype=jnp.float32)[:, None]
    _2i = jnp.arange(0, d_model, 2, dtype=jnp.float32)
    div = jnp.power(10000.0, _2i / d_model)
    enc = jnp.zeros((max_len, d_model), jnp.float32)
    enc = enc.at[:, 0::2].set(jnp.sin(pos / div))
    enc = enc.at[:, 1::2].set(jnp.cos(pos / div))
    return enc


def embedding(emb_table, pos_enc, tokens):
    tok = jnp.take(emb_table, tokens, axis=0)          # (B, S, D)
    pos = pos_enc[: tokens.shape[1], :]                # (S, D)
    return tok + pos[None, :, :]                       # dropout == identity


def multi_head_attention(p, x_q, x_kv, bias, n_head, *, self_attn):
    B, Sq, D = x_q.shape
    Sk = x_kv.shape[1]
    if self_attn:
        # one fused (D, 3D) projection for Q, K, V
        qkv = pl_linear(x_q.reshape(-1, D), p["w_qkv"], p["b_qkv"])
        q = qkv[:, :D]
        k = qkv[:, D:2 * D]
        v = qkv[:, 2 * D:]
    else:
        q = pl_linear(x_q.reshape(-1, D), p["w_qkv"][:, :D], p["b_qkv"][:D])
        kv = pl_linear(x_kv.reshape(-1, D), p["w_qkv"][:, D:], p["b_qkv"][D:])
        k = kv[:, :D]
        v = kv[:, D:]
    q = q.reshape(B, Sq, D)
    k = k.reshape(B, Sk, D)
    v = v.reshape(B, Sk, D)
    ctx = pl_attention(q, k, v, bias, n_head)           # (B, Sq, D), heads fused
    out = pl_linear(ctx.reshape(-1, D), p["w_o"]["w"], p["w_o"]["b"])
    return out.reshape(B, Sq, D)


def feed_forward(p, x2d):
    h = pl_linear(x2d, p["w1"]["w"], p["w1"]["b"], activation="relu")
    return pl_linear(h, p["w2"]["w"], p["w2"]["b"])


def encoder_layer(p, x, s_bias, n_head):
    B, S, D = x.shape
    x2 = x.reshape(-1, D)
    attn = multi_head_attention(p["attn"], x, x, s_bias, n_head, self_attn=True)
    x2 = pl_add_layernorm(attn.reshape(-1, D), x2, p["norm1_g"], p["norm1_b"])
    ffn = feed_forward(p["ffn"], x2)
    x2 = pl_add_layernorm(ffn, x2, p["norm2_g"], p["norm2_b"])
    return x2.reshape(B, S, D)


def decoder_layer(p, dec, enc, t_bias, s_bias, n_head):
    B, S, D = dec.shape
    x2 = dec.reshape(-1, D)
    attn = multi_head_attention(p["self_attn"], dec, dec, t_bias, n_head,
                                self_attn=True)
    x2 = pl_add_layernorm(attn.reshape(-1, D), x2, p["norm1_g"], p["norm1_b"])
    x3 = x2.reshape(B, S, D)
    attn = multi_head_attention(p["enc_dec_attn"], x3, enc, s_bias, n_head,
                                self_attn=False)
    x2 = pl_add_layernorm(attn.reshape(-1, D), x2, p["norm2_g"], p["norm2_b"])
    ffn = feed_forward(p["ffn"], x2)
    x2 = pl_add_layernorm(ffn, x2, p["norm3_g"], p["norm3_b"])
    return x2.reshape(B, S, D)


def make_pad_mask(q, k, pad_idx):
    # (B, len_q, len_k) bool, 1 = keep
    k_m = (k != pad_idx)[:, None, :]
    q_m = (q != pad_idx)[:, :, None]
    return k_m & q_m


def make_no_peak_mask(len_q, len_k):
    return jnp.tril(jnp.ones((len_q, len_k), dtype=bool))


def mask_to_bias(mask):
    # additive f32 bias: 0 where kept, -10000 where masked
    return (mask.astype(jnp.float32) - 1.0) * 10000.0


def transformer_forward(params, src, trg, *, src_pad_idx, n_head):
    src_bias = mask_to_bias(make_pad_mask(src, src, src_pad_idx))
    src_trg_bias = mask_to_bias(make_pad_mask(trg, src, src_pad_idx))
    trg_bias = mask_to_bias(
        make_pad_mask(trg, trg, src_pad_idx)
        & make_no_peak_mask(trg.shape[1], trg.shape[1])[None])

    # Encoder
    x = embedding(params["enc_emb"], params["pos_enc"], src)
    for lp in params["enc_layers"]:
        x = encoder_layer(lp, x, src_bias, n_head)
    enc_src = x

    # Decoder
    y = embedding(params["dec_emb"], params["pos_enc"], trg)
    for lp in params["dec_layers"]:
        y = decoder_layer(lp, y, enc_src, trg_bias, src_trg_bias, n_head)

    # Final vocabulary projection (tiled over N/K by pl_linear)
    B, S, D = y.shape
    logits = pl_linear(y.reshape(-1, D),
                       params["out_proj"]["w"], params["out_proj"]["b"])
    return logits.reshape(B, S, -1)


# ----------------------------------------------------------------------------
# Deterministic parameter initialization
# ----------------------------------------------------------------------------
def init_params(key, *, enc_voc, dec_voc, d_model, ffn_hidden, n_layers, max_len):
    keys = iter(jax.random.split(key, 512))

    def dense(d_in, d_out):
        return {
            "w": jax.random.normal(next(keys), (d_in, d_out), jnp.float32) * 0.02,
            "b": jnp.zeros((d_out,), jnp.float32),
        }

    def mha():
        return {
            "w_qkv": jax.random.normal(next(keys), (d_model, 3 * d_model),
                                       jnp.float32) * 0.02,
            "b_qkv": jnp.zeros((3 * d_model,), jnp.float32),
            "w_o": dense(d_model, d_model),
        }

    def enc_layer():
        return {
            "attn": mha(),
            "ffn": {"w1": dense(d_model, ffn_hidden), "w2": dense(ffn_hidden, d_model)},
            "norm1_g": jnp.ones((d_model,), jnp.float32),
            "norm1_b": jnp.zeros((d_model,), jnp.float32),
            "norm2_g": jnp.ones((d_model,), jnp.float32),
            "norm2_b": jnp.zeros((d_model,), jnp.float32),
        }

    def dec_layer():
        return {
            "self_attn": mha(),
            "enc_dec_attn": mha(),
            "ffn": {"w1": dense(d_model, ffn_hidden), "w2": dense(ffn_hidden, d_model)},
            "norm1_g": jnp.ones((d_model,), jnp.float32),
            "norm1_b": jnp.zeros((d_model,), jnp.float32),
            "norm2_g": jnp.ones((d_model,), jnp.float32),
            "norm2_b": jnp.zeros((d_model,), jnp.float32),
            "norm3_g": jnp.ones((d_model,), jnp.float32),
            "norm3_b": jnp.zeros((d_model,), jnp.float32),
        }

    return {
        "enc_emb": jax.random.normal(next(keys), (enc_voc, d_model), jnp.float32) * 0.02,
        "dec_emb": jax.random.normal(next(keys), (dec_voc, d_model), jnp.float32) * 0.02,
        "pos_enc": sinusoid_encoding(max_len, d_model),
        "enc_layers": [enc_layer() for _ in range(n_layers)],
        "dec_layers": [dec_layer() for _ in range(n_layers)],
        "out_proj": dense(d_model, dec_voc),
    }


# ----------------------------------------------------------------------------
# Main
# ----------------------------------------------------------------------------
if __name__ == "__main__":
    # Small config consistent with the module's constructor args
    src_pad_idx = 0
    enc_voc_size = 32
    dec_voc_size = 32
    d_model = 32
    n_head = 4
    max_len = 16
    ffn_hidden = 64
    n_layers = 2
    batch = 2
    src_len = 8
    trg_len = 8

    key = jax.random.PRNGKey(0)
    k_params, k_src, k_trg = jax.random.split(key, 3)

    params = init_params(k_params, enc_voc=enc_voc_size, dec_voc=dec_voc_size,
                         d_model=d_model, ffn_hidden=ffn_hidden,
                         n_layers=n_layers, max_len=max_len)

    # tokens in [1, voc) with a couple of pad tokens at the tail
    src = jax.random.randint(k_src, (batch, src_len), 1, enc_voc_size, dtype=jnp.int32)
    trg = jax.random.randint(k_trg, (batch, trg_len), 1, dec_voc_size, dtype=jnp.int32)
    src = src.at[:, -1].set(src_pad_idx)
    trg = trg.at[:, -1].set(src_pad_idx)

    fwd = jax.jit(functools.partial(transformer_forward,
                                    src_pad_idx=src_pad_idx, n_head=n_head))
    out = fwd(params, src, trg)
    out = jax.block_until_ready(out)

    assert out.shape == (batch, trg_len, dec_voc_size), out.shape
    assert bool(jnp.all(jnp.isfinite(out)))
    print("KERNEL_OK")
</pallas_src>

<mosaic_0001>
module attributes {stable_mosaic.version = 11 : i64} {
  func.func @linear_kernel(%arg0: i32, %arg1: i32, %arg2: i32, %arg3: memref<16x128xf32, #tpu.memory_space<vmem>>, %arg4: memref<128x128xf32, #tpu.memory_space<vmem>>, %arg5: memref<1x128xf32, #tpu.memory_space<vmem>>, %arg6: memref<16x128xf32, #tpu.memory_space<vmem>>, %arg7: memref<16x128xf32, #tpu.memory_space<vmem>>) attributes {dimension_semantics = [#tpu.dimension_semantics<parallel>, #tpu.dimension_semantics<parallel>, #tpu.dimension_semantics<arbitrary>], iteration_bounds = array<i64: 1, 1, 1>, scalar_prefetch = 0 : i64, scratch_operands = 1 : i64, tpu.core_type = #tpu.core_type<tc>, window_params = [{transform_indices = @transform_0, window_bounds = array<i64: 16, 128>}, {transform_indices = @transform_1, window_bounds = array<i64: 128, 128>}, {transform_indices = @transform_2, window_bounds = array<i64: 1, 128>}, {transform_indices = @transform_3, window_bounds = array<i64: 16, 128>}]} {
    %c0_i32 = arith.constant 0 : i32
    %0 = arith.cmpi eq, %arg2, %c0_i32 : i32
    %1 = arith.extui %0 : i1 to i32
    %c0_i32_0 = arith.constant 0 : i32
    %2 = arith.cmpi ne, %1, %c0_i32_0 : i32
    scf.if %2 {
      %cst_10 = arith.constant 0.000000e+00 : f32
      %12 = vector.broadcast %cst_10 : f32 to vector<16x128xf32>
      %c0_11 = arith.constant 0 : index
      %c0_12 = arith.constant 0 : index
      %13 = vector.load %arg7[%c0_11, %c0_12] : memref<16x128xf32, #tpu.memory_space<vmem>>, vector<16x128xf32>
      tpu.vector_store %arg7[%c0_11, %c0_12], %12 {strides = array<i32>} : memref<16x128xf32, #tpu.memory_space<vmem>>, vector<16x128xf32>,
    } else {
    }
    %c0 = arith.constant 0 : index
    %c0_1 = arith.constant 0 : index
    %3 = vector.load %arg7[%c0, %c0_1] : memref<16x128xf32, #tpu.memory_space<vmem>>, vector<16x128xf32>
    %c0_2 = arith.constant 0 : index
    %c0_3 = arith.constant 0 : index
    %4 = vector.load %arg3[%c0_2, %c0_3] : memref<16x128xf32, #tpu.memory_space<vmem>>, vector<16x128xf32>
    %c0_4 = arith.constant 0 : index
    %c0_5 = arith.constant 0 : index
    %5 = vector.load %arg4[%c0_4, %c0_5] : memref<128x128xf32, #tpu.memory_space<vmem>>, vector<128x128xf32>
    %cst = arith.constant dense<0.000000e+00> : vector<16x128xf32>
    %6 = tpu.matmul %4, %5, %cst {dimension_numbers = #tpu.dot_dimension_numbers<[1], [0], [0], [1], [0, 0, 1, 1], [], []>} : vector<16x128xf32>, vector<128x128xf32>, vector<16x128xf32> -> vector<16x128xf32>
    %7 = arith.addf %3, %6 : vector<16x128xf32>
    %c0_6 = arith.constant 0 : index
    %c0_7 = arith.constant 0 : index
    %8 = vector.load %arg7[%c0_6, %c0_7] : memref<16x128xf32, #tpu.memory_space<vmem>>, vector<16x128xf32>
    tpu.vector_store %arg7[%c0_6, %c0_7], %7 {strides = array<i32>} : memref<16x128xf32, #tpu.memory_space<vmem>>, vector<16x128xf32>,
    %c0_i32_8 = arith.constant 0 : i32
    %9 = arith.cmpi eq, %arg2, %c0_i32_8 : i32
    %10 = arith.extui %9 : i1 to i32
    %c0_i32_9 = arith.constant 0 : i32
    %11 = arith.cmpi ne, %10, %c0_i32_9 : i32
    scf.if %11 {
      %c0_10 = arith.constant 0 : index
      %c0_11 = arith.constant 0 : index
      %12 = vector.load %arg7[%c0_10, %c0_11] : memref<16x128xf32, #tpu.memory_space<vmem>>, vector<16x128xf32>
      %c0_12 = arith.constant 0 : index
      %c0_13 = arith.constant 0 : index
      %13 = vector.load %arg5[%c0_12, %c0_13] : memref<1x128xf32, #tpu.memory_space<vmem>>, vector<1x128xf32>
      %14 = vector.broadcast %13 : vector<1x128xf32> to vector<16x128xf32>
      %15 = arith.addf %12, %14 : vector<16x128xf32>
      %c0_14 = arith.constant 0 : index
      %c0_15 = arith.constant 0 : index
      %16 = vector.load %arg6[%c0_14, %c0_15] : memref<16x128xf32, #tpu.memory_space<vmem>>, vector<16x128xf32>
      tpu.vector_store %arg6[%c0_14, %c0_15], %15 {strides = array<i32>} : memref<16x128xf32, #tpu.memory_space<vmem>>, vector<16x128xf32>,
    } else {
    }
    return
  }
  func.func @transform_0(%arg0: i32, %arg1: i32, %arg2: i32) -> (i32, i32) {
    %c0_i32 = arith.constant 0 : i32
    return %arg0, %arg2 : i32, i32
  }
  func.func @transform_1(%arg0: i32, %arg1: i32, %arg2: i32) -> (i32, i32) {
    %c0_i32 = arith.constant 0 : i32
    return %arg2, %arg1 : i32, i32
  }
  func.func @transform_2(%arg0: i32, %arg1: i32, %arg2: i32) -> (i32, i32) {
    %c0_i32 = arith.constant 0 : i32
    %c0_i32_0 = arith.constant 0 : i32
    return %c0_i32, %arg1 : i32, i32
  }
  func.func @transform_3(%arg0: i32, %arg1: i32, %arg2: i32) -> (i32, i32) {
    %c0_i32 = arith.constant 0 : i32
    return %arg0, %arg1 : i32, i32
  }
}

module attributes {stable_mosaic.version = 11 : i64} {
  func.func @mha_attention_kernel(%arg0: i32, %arg1: memref<1x8x32xf32, #tpu.memory_space<vmem>>, %arg2: memref<1x8x32xf32, #tpu.memory_space<vmem>>, %arg3: memref<1x8x32xf32, #tpu.memory_space<vmem>>, %arg4: memref<1x8x8xf32, #tpu.memory_space<vmem>>, %arg5: memref<1x8x32xf32, #tpu.memory_space<vmem>>) attributes {dimension_semantics = [#tpu.dimension_semantics<parallel>], iteration_bounds = array<i64: 2>, scalar_prefetch = 0 : i64, scratch_operands = 0 : i64, tpu.core_type = #tpu.core_type<tc>, window_params = [{transform_indices = @transform_0, window_bounds = array<i64: 1, 8, 32>}, {transform_indices = @transform_1, window_bounds = array<i64: 1, 8, 32>}, {transform_indices = @transform_2, window_bounds = array<i64: 1, 8, 32>}, {transform_indices = @transform_3, window_bounds = array<i64: 1, 8, 8>}, {transform_indices = @transform_4, window_bounds = array<i64: 1, 8, 32>}]} {
    %c0 = arith.constant 0 : index
    %c0_0 = arith.constant 0 : index
    %c0_1 = arith.constant 0 : index
    %0 = vector.load %arg1[%c0, %c0_0, %c0_1] : memref<1x8x32xf32, #tpu.memory_space<vmem>>, vector<1x8x32xf32>
    %1 = vector.shape_cast %0 : vector<1x8x32xf32> to vector<8x32xf32>
    %c0_2 = arith.constant 0 : index
    %c0_3 = arith.constant 0 : index
    %c0_4 = arith.constant 0 : index
    %2 = vector.load %arg2[%c0_2, %c0_3, %c0_4] : memref<1x8x32xf32, #tpu.memory_space<vmem>>, vector<1x8x32xf32>
    %3 = vector.shape_cast %2 : vector<1x8x32xf32> to vector<8x32xf32>
    %c0_5 = arith.constant 0 : index
    %c0_6 = arith.constant 0 : index
    %c0_7 = arith.constant 0 : index
    %4 = vector.load %arg3[%c0_5, %c0_6, %c0_7] : memref<1x8x32xf32, #tpu.memory_space<vmem>>, vector<1x8x32xf32>
    %5 = vector.shape_cast %4 : vector<1x8x32xf32> to vector<8x32xf32>
    %c0_8 = arith.constant 0 : index
    %c0_9 = arith.constant 0 : index
    %c0_10 = arith.constant 0 : index
    %6 = vector.load %arg4[%c0_8, %c0_9, %c0_10] : memref<1x8x8xf32, #tpu.memory_space<vmem>>, vector<1x8x8xf32>
    %7 = vector.shape_cast %6 : vector<1x8x8xf32> to vector<8x8xf32>
    %8 = vector.extract_strided_slice %1 {offsets = [0, 0], sizes = [8, 8], strides = [1, 1]} : vector<8x32xf32> to vector<8x8xf32>
    %9 = vector.extract_strided_slice %3 {offsets = [0, 0], sizes = [8, 8], strides = [1, 1]} : vector<8x32xf32> to vector<8x8xf32>
    %10 = vector.extract_strided_slice %5 {offsets = [0, 0], sizes = [8, 8], strides = [1, 1]} : vector<8x32xf32> to vector<8x8xf32>
    %cst = arith.constant dense<0.000000e+00> : vector<8x8xf32>
    %11 = tpu.matmul %8, %9, %cst {dimension_numbers = #tpu.dot_dimension_numbers<[1], [1], [0], [0], [0, 0, 1, 0], [], []>} : vector<8x8xf32>, vector<8x8xf32>, vector<8x8xf32> -> vector<8x8xf32>
    %cst_11 = arith.constant 0.353553385 : f32
    %12 = vector.broadcast %cst_11 : f32 to vector<8x8xf32>
    %13 = arith.mulf %11, %12 : vector<8x8xf32>
    %14 = arith.addf %13, %7 : vector<8x8xf32>
    %cst_12 = arith.constant dense<0xFF800000> : vector<8xf32>
    %15 = vector.multi_reduction <maximumf>, %14, %cst_12 [1] : vector<8x8xf32> to vector<8xf32>
    %16 = vector.shape_cast %15 : vector<8xf32> to vector<8x1xf32>
    %17 = vector.broadcast %16 : vector<8x1xf32> to vector<8x8xf32>
    %18 = arith.subf %14, %17 : vector<8x8xf32>
    %19 = math.exp %18 : vector<8x8xf32>
    %cst_13 = arith.constant dense<0.000000e+00> : vector<8xf32>
    %20 = vector.multi_reduction <add>, %19, %cst_13 [1] : vector<8x8xf32> to vector<8xf32>
    %21 = vector.shape_cast %20 : vector<8xf32> to vector<8x1xf32>
    %22 = tpu.reciprocal %21 {approx = true} : vector<8x1xf32> -> vector<8x1xf32>
    %23 = vector.broadcast %22 : vector<8x1xf32> to vector<8x8xf32>
    %24 = arith.mulf %19, %23 : vector<8x8xf32>
    %cst_14 = arith.constant dense<0.000000e+00> : vector<8x8xf32>
    %25 = tpu.matmul %24, %10, %cst_14 {dimension_numbers = #tpu.dot_dimension_numbers<[1], [0], [0], [1], [0, 0, 1, 1], [], []>} : vector<8x8xf32>, vector<8x8xf32>, vector<8x8xf32> -> vector<8x8xf32>
    %26 = vector.extract_strided_slice %1 {offsets = [0, 8], sizes = [8, 8], strides = [1, 1]} : vector<8x32xf32> to vector<8x8xf32>
    %27 = vector.extract_strided_slice %3 {offsets = [0, 8], sizes = [8, 8], strides = [1, 1]} : vector<8x32xf32> to vector<8x8xf32>
    %28 = vector.extract_strided_slice %5 {offsets = [0, 8], sizes = [8, 8], strides = [1, 1]} : vector<8x32xf32> to vector<8x8xf32>
    %cst_15 = arith.constant dense<0.000000e+00> : vector<8x8xf32>
    %29 = tpu.matmul %26, %27, %cst_15 {dimension_numbers = #tpu.dot_dimension_numbers<[1], [1], [0], [0], [0, 0, 1, 0], [], []>} : vector<8x8xf32>, vector<8x8xf32>, vector<8x8xf32> -> vector<8x8xf32>
    %cst_16 = arith.constant 0.353553385 : f32
    %30 = vector.broadcast %cst_16 : f32 to vector<8x8xf32>
    %31 = arith.mulf %29, %30 : vector<8x8xf32>
    %32 = arith.addf %31, %7 : vector<8x8xf32>
    %cst_17 = arith.constant dense<0xFF800000> : vector<8xf32>
    %33 = vector.multi_reduction <maximumf>, %32, %cst_17 [1] : vector<8x8xf32> to vector<8xf32>
    %34 = vector.shape_cast %33 : vector<8xf32> to vector<8x1xf32>
    %35 = vector.broadcast %34 : vector<8x1xf32> to vector<8x8xf32>
    %36 = arith.subf %32, %35 : vector<8x8xf32>
    %37 = math.exp %36 : vector<8x8xf32>
    %cst_18 = arith.constant dense<0.000000e+00> : vector<8xf32>
    %38 = vector.multi_reduction <add>, %37, %cst_18 [1] : vector<8x8xf32> to vector<8xf32>
    %39 = vector.shape_cast %38 : vector<8xf32> to vector<8x1xf32>
    %40 = tpu.reciprocal %39 {approx = true} : vector<8x1xf32> -> vector<8x1xf32>
    %41 = vector.broadcast %40 : vector<8x1xf32> to vector<8x8xf32>
    %42 = arith.mulf %37, %41 : vector<8x8xf32>
    %cst_19 = arith.constant dense<0.000000e+00> : vector<8x8xf32>
    %43 = tpu.matmul %42, %28, %cst_19 {dimension_numbers = #tpu.dot_dimension_numbers<[1], [0], [0], [1], [0, 0, 1, 1], [], []>} : vector<8x8xf32>, vector<8x8xf32>, vector<8x8xf32> -> vector<8x8xf32>
    %44 = vector.extract_strided_slice %1 {offsets = [0, 16], sizes = [8, 8], strides = [1, 1]} : vector<8x32xf32> to vector<8x8xf32>
    %45 = vector.extract_strided_slice %3 {offsets = [0, 16], sizes = [8, 8], strides = [1, 1]} : vector<8x32xf32> to vector<8x8xf32>
    %46 = vector.extract_strided_slice %5 {offsets = [0, 16], sizes = [8, 8], strides = [1, 1]} : vector<8x32xf32> to vector<8x8xf32>
    %cst_20 = arith.constant dense<0.000000e+00> : vector<8x8xf32>
    %47 = tpu.matmul %44, %45, %cst_20 {dimension_numbers = #tpu.dot_dimension_numbers<[1], [1], [0], [0], [0, 0, 1, 0], [], []>} : vector<8x8xf32>, vector<8x8xf32>, vector<8x8xf32> -> vector<8x8xf32>
    %cst_21 = arith.constant 0.353553385 : f32
    %48 = vector.broadcast %cst_21 : f32 to vector<8x8xf32>
    %49 = arith.mulf %47, %48 : vector<8x8xf32>
    %50 = arith.addf %49, %7 : vector<8x8xf32>
    %cst_22 = arith.constant dense<0xFF800000> : vector<8xf32>
    %51 = vector.multi_reduction <maximumf>, %50, %cst_22 [1] : vector<8x8xf32> to vector<8xf32>
    %52 = vector.shape_cast %51 : vector<8xf32> to vector<8x1xf32>
    %53 = vector.broadcast %52 : vector<8x1xf32> to vector<8x8xf32>
    %54 = arith.subf %50, %53 : vector<8x8xf32>
    %55 = math.exp %54 : vector<8x8xf32>
    %cst_23 = arith.constant dense<0.000000e+00> : vector<8xf32>
    %56 = vector.multi_reduction <add>, %55, %cst_23 [1] : vector<8x8xf32> to vector<8xf32>
    %57 = vector.shape_cast %56 : vector<8xf32> to vector<8x1xf32>
    %58 = tpu.reciprocal %57 {approx = true} : vector<8x1xf32> -> vector<8x1xf32>
    %59 = vector.broadcast %58 : vector<8x1xf32> to vector<8x8xf32>
    %60 = arith.mulf %55, %59 : vector<8x8xf32>
    %cst_24 = arith.constant dense<0.000000e+00> : vector<8x8xf32>
    %61 = tpu.matmul %60, %46, %cst_24 {dimension_numbers = #tpu.dot_dimension_numbers<[1], [0], [0], [1], [0, 0, 1, 1], [], []>} : vector<8x8xf32>, vector<8x8xf32>, vector<8x8xf32> -> vector<8x8xf32>
    %62 = vector.extract_strided_slice %1 {offsets = [0, 24], sizes = [8, 8], strides = [1, 1]} : vector<8x32xf32> to vector<8x8xf32>
    %63 = vector.extract_strided_slice %3 {offsets = [0, 24], sizes = [8, 8], strides = [1, 1]} : vector<8x32xf32> to vector<8x8xf32>
    %64 = vector.extract_strided_slice %5 {offsets = [0, 24], sizes = [8, 8], strides = [1, 1]} : vector<8x32xf32> to vector<8x8xf32>
    %cst_25 = arith.constant dense<0.000000e+00> : vector<8x8xf32>
    %65 = tpu.matmul %62, %63, %cst_25 {dimension_numbers = #tpu.dot_dimension_numbers<[1], [1], [0], [0], [0, 0, 1, 0], [], []>} : vector<8x8xf32>, vector<8x8xf32>, vector<8x8xf32> -> vector<8x8xf32>
    %cst_26 = arith.constant 0.353553385 : f32
    %66 = vector.broadcast %cst_26 : f32 to vector<8x8xf32>
    %67 = arith.mulf %65, %66 : vector<8x8xf32>
    %68 = arith.addf %67, %7 : vector<8x8xf32>
    %cst_27 = arith.constant dense<0xFF800000> : vector<8xf32>
    %69 = vector.multi_reduction <maximumf>, %68, %cst_27 [1] : vector<8x8xf32> to vector<8xf32>
    %70 = vector.shape_cast %69 : vector<8xf32> to vector<8x1xf32>
    %71 = vector.broadcast %70 : vector<8x1xf32> to vector<8x8xf32>
    %72 = arith.subf %68, %71 : vector<8x8xf32>
    %73 = math.exp %72 : vector<8x8xf32>
    %cst_28 = arith.constant dense<0.000000e+00> : vector<8xf32>
    %74 = vector.multi_reduction <add>, %73, %cst_28 [1] : vector<8x8xf32> to vector<8xf32>
    %75 = vector.shape_cast %74 : vector<8xf32> to vector<8x1xf32>
    %76 = tpu.reciprocal %75 {approx = true} : vector<8x1xf32> -> vector<8x1xf32>
    %77 = vector.broadcast %76 : vector<8x1xf32> to vector<8x8xf32>
    %78 = arith.mulf %73, %77 : vector<8x8xf32>
    %cst_29 = arith.constant dense<0.000000e+00> : vector<8x8xf32>
    %79 = tpu.matmul %78, %64, %cst_29 {dimension_numbers = #tpu.dot_dimension_numbers<[1], [0], [0], [1], [0, 0, 1, 1], [], []>} : vector<8x8xf32>, vector<8x8xf32>, vector<8x8xf32> -> vector<8x8xf32>
    %80 = tpu.concatenate %25, %43, %61, %79 in 1 : vector<8x8xf32>, vector<8x8xf32>, vector<8x8xf32>, vector<8x8xf32> -> vector<8x32xf32>
    %c0_30 = arith.constant 0 : index
    %c0_31 = arith.constant 0 : index
    %c0_32 = arith.constant 0 : index
    %81 = vector.load %arg5[%c0_30, %c0_31, %c0_32] : memref<1x8x32xf32, #tpu.memory_space<vmem>>, vector<1x8x32xf32>
    %82 = vector.shape_cast %81 : vector<1x8x32xf32> to vector<8x32xf32>
    %83 = vector.shape_cast %80 : vector<8x32xf32> to vector<1x8x32xf32>
    tpu.vector_store %arg5[%c0_30, %c0_31, %c0_32], %83 {strides = array<i32>} : memref<1x8x32xf32, #tpu.memory_space<vmem>>, vector<1x8x32xf32>,
    return
  }
  func.func @transform_0(%arg0: i32) -> (i32, i32, i32) {
    %c0_i32 = arith.constant 0 : i32
    %c0_i32_0 = arith.constant 0 : i32
    %c0_i32_1 = arith.constant 0 : i32
    return %arg0, %c0_i32, %c0_i32_0 : i32, i32, i32
  }
  func.func @transform_1(%arg0: i32) -> (i32, i32, i32) {
    %c0_i32 = arith.constant 0 : i32
    %c0_i32_0 = arith.constant 0 : i32
    %c0_i32_1 = arith.constant 0 : i32
    return %arg0, %c0_i32, %c0_i32_0 : i32, i32, i32
  }
  func.func @transform_2(%arg0: i32) -> (i32, i32, i32) {
    %c0_i32 = arith.constant 0 : i32
    %c0_i32_0 = arith.constant 0 : i32
    %c0_i32_1 = arith.constant 0 : i32
    return %arg0, %c0_i32, %c0_i32_0 : i32, i32, i32
  }
  func.func @transform_3(%arg0: i32) -> (i32, i32, i32) {
    %c0_i32 = arith.constant 0 : i32
    %c0_i32_0 = arith.constant 0 : i32
    %c0_i32_1 = arith.constant 0 : i32
    return %arg0, %c0_i32, %c0_i32_0 : i32, i32, i32
  }
  func.func @transform_4(%arg0: i32) -> (i32, i32, i32) {
    %c0_i32 = arith.constant 0 : i32
    %c0_i32_0 = arith.constant 0 : i32
    %c0_i32_1 = arith.constant 0 : i32
    return %arg0, %c0_i32, %c0_i32_0 : i32, i32, i32
  }
}

module attributes {stable_mosaic.version = 11 : i64} {
  func.func @add_layernorm_kernel(%arg0: i32, %arg1: memref<16x32xf32, #tpu.memory_space<vmem>>, %arg2: memref<16x32xf32, #tpu.memory_space<vmem>>, %arg3: memref<1x32xf32, #tpu.memory_space<vmem>>, %arg4: memref<1x32xf32, #tpu.memory_space<vmem>>, %arg5: memref<16x32xf32, #tpu.memory_space<vmem>>) attributes {dimension_semantics = [#tpu.dimension_semantics<parallel>], iteration_bounds = array<i64: 1>, scalar_prefetch = 0 : i64, scratch_operands = 0 : i64, tpu.core_type = #tpu.core_type<tc>, window_params = [{transform_indices = @transform_0, window_bounds = array<i64: 16, 32>}, {transform_indices = @transform_1, window_bounds = array<i64: 16, 32>}, {pipeline_mode = #tpu.pipeline_mode<synchronous>, transform_indices = @transform_2, window_bounds = array<i64: 1, 32>}, {pipeline_mode = #tpu.pipeline_mode<synchronous>, transform_indices = @transform_3, window_bounds = array<i64: 1, 32>}, {transform_indices = @transform_4, window_bounds = array<i64: 16, 32>}]} {
    %c0 = arith.constant 0 : index
    %c0_0 = arith.constant 0 : index
    %0 = vector.load %arg1[%c0, %c0_0] : memref<16x32xf32, #tpu.memory_space<vmem>>, vector<16x32xf32>
    %c0_1 = arith.constant 0 : index
    %c0_2 = arith.constant 0 : index
    %1 = vector.load %arg2[%c0_1, %c0_2] : memref<16x32xf32, #tpu.memory_space<vmem>>, vector<16x32xf32>
    %2 = arith.addf %0, %1 : vector<16x32xf32>
    %cst = arith.constant dense<0.000000e+00> : vector<16xf32>
    %3 = vector.multi_reduction <add>, %2, %cst [1] : vector<16x32xf32> to vector<16xf32>
    %4 = vector.shape_cast %3 : vector<16xf32> to vector<16x1xf32>
    %cst_3 = arith.constant 3.200000e+01 : f32
    %5 = vector.broadcast %cst_3 : f32 to vector<16x1xf32>
    %6 = arith.divf %4, %5 : vector<16x1xf32>
    %7 = vector.broadcast %6 : vector<16x1xf32> to vector<16x32xf32>
    %8 = arith.subf %2, %7 : vector<16x32xf32>
    %9 = arith.mulf %8, %8 : vector<16x32xf32>
    %cst_4 = arith.constant dense<0.000000e+00> : vector<16xf32>
    %10 = vector.multi_reduction <add>, %9, %cst_4 [1] : vector<16x32xf32> to vector<16xf32>
    %11 = vector.shape_cast %10 : vector<16xf32> to vector<16x1xf32>
    %cst_5 = arith.constant 3.200000e+01 : f32
    %12 = vector.broadcast %cst_5 : f32 to vector<16x1xf32>
    %13 = arith.divf %11, %12 : vector<16x1xf32>
    %cst_6 = arith.constant 9.99999996E-13 : f32
    %14 = vector.broadcast %cst_6 : f32 to vector<16x1xf32>
    %15 = arith.addf %13, %14 : vector<16x1xf32>
    %16 = math.rsqrt %15 : vector<16x1xf32>
    %17 = vector.broadcast %16 : vector<16x1xf32> to vector<16x32xf32>
    %18 = arith.mulf %8, %17 : vector<16x32xf32>
    %c0_7 = arith.constant 0 : index
    %c0_8 = arith.constant 0 : index
    %19 = vector.load %arg3[%c0_7, %c0_8] : memref<1x32xf32, #tpu.memory_space<vmem>>, vector<1x32xf32>
    %20 = vector.broadcast %19 : vector<1x32xf32> to vector<16x32xf32>
    %21 = arith.mulf %18, %20 : vector<16x32xf32>
    %c0_9 = arith.constant 0 : index
    %c0_10 = arith.constant 0 : index
    %22 = vector.load %arg4[%c0_9, %c0_10] : memref<1x32xf32, #tpu.memory_space<vmem>>, vector<1x32xf32>
    %23 = vector.broadcast %22 : vector<1x32xf32> to vector<16x32xf32>
    %24 = arith.addf %21, %23 : vector<16x32xf32>
    %c0_11 = arith.constant 0 : index
    %c0_12 = arith.constant 0 : index
    %25 = vector.load %arg5[%c0_11, %c0_12] : memref<16x32xf32, #tpu.memory_space<vmem>>, vector<16x32xf32>
    tpu.vector_store %arg5[%c0_11, %c0_12], %24 {strides = array<i32>} : memref<16x32xf32, #tpu.memory_space<vmem>>, vector<16x32xf32>,
    return
  }
  func.func @transform_0(%arg0: i32) -> (i32, i32) {
    %c0_i32 = arith.constant 0 : i32
    %c0_i32_0 = arith.constant 0 : i32
    return %arg0, %c0_i32 : i32, i32
  }
  func.func @transform_1(%arg0: i32) -> (i32, i32) {
    %c0_i32 = arith.constant 0 : i32
    %c0_i32_0 = arith.constant 0 : i32
    return %arg0, %c0_i32 : i32, i32
  }
  func.func @transform_2(%arg0: i32) -> (i32, i32) {
    %c0_i32 = arith.constant 0 : i32
    %c0_i32_0 = arith.constant 0 : i32
    %c0_i32_1 = arith.constant 0 : i32
    return %c0_i32, %c0_i32_0 : i32, i32
  }
  func.func @transform_3(%arg0: i32) -> (i32, i32) {
    %c0_i32 = arith.constant 0 : i32
    %c0_i32_0 = arith.constant 0 : i32
    %c0_i32_1 = arith.constant 0 : i32
    return %c0_i32, %c0_i32_0 : i32, i32
  }
  func.func @transform_4(%arg0: i32) -> (i32, i32) {
    %c0_i32 = arith.constant 0 : i32
    %c0_i32_0 = arith.constant 0 : i32
    return %arg0, %c0_i32 : i32, i32
  }
}

module attributes {stable_mosaic.version = 11 : i64} {
  func.func @linear_kernel(%arg0: i32, %arg1: i32, %arg2: i32, %arg3: memref<16x128xf32, #tpu.memory_space<vmem>>, %arg4: memref<128x128xf32, #tpu.memory_space<vmem>>, %arg5: memref<1x128xf32, #tpu.memory_space<vmem>>, %arg6: memref<16x128xf32, #tpu.memory_space<vmem>>, %arg7: memref<16x128xf32, #tpu.memory_space<vmem>>) attributes {dimension_semantics = [#tpu.dimension_semantics<parallel>, #tpu.dimension_semantics<parallel>, #tpu.dimension_semantics<arbitrary>], iteration_bounds = array<i64: 1, 1, 1>, scalar_prefetch = 0 : i64, scratch_operands = 1 : i64, tpu.core_type = #tpu.core_type<tc>, window_params = [{transform_indices = @transform_0, window_bounds = array<i64: 16, 128>}, {transform_indices = @transform_1, window_bounds = array<i64: 128, 128>}, {transform_indices = @transform_2, window_bounds = array<i64: 1, 128>}, {transform_indices = @transform_3, window_bounds = array<i64: 16, 128>}]} {
    %c0_i32 = arith.constant 0 : i32
    %0 = arith.cmpi eq, %arg2, %c0_i32 : i32
    %1 = arith.extui %0 : i1 to i32
    %c0_i32_0 = arith.constant 0 : i32
    %2 = arith.cmpi ne, %1, %c0_i32_0 : i32
    scf.if %2 {
      %cst_10 = arith.constant 0.000000e+00 : f32
      %12 = vector.broadcast %cst_10 : f32 to vector<16x128xf32>
      %c0_11 = arith.constant 0 : index
      %c0_12 = arith.constant 0 : index
      %13 = vector.load %arg7[%c0_11, %c0_12] : memref<16x128xf32, #tpu.memory_space<vmem>>, vector<16x128xf32>
      tpu.vector_store %arg7[%c0_11, %c0_12], %12 {strides = array<i32>} : memref<16x128xf32, #tpu.memory_space<vmem>>, vector<16x128xf32>,
    } else {
    }
    %c0 = arith.constant 0 : index
    %c0_1 = arith.constant 0 : index
    %3 = vector.load %arg7[%c0, %c0_1] : memref<16x128xf32, #tpu.memory_space<vmem>>, vector<16x128xf32>
    %c0_2 = arith.constant 0 : index
    %c0_3 = arith.constant 0 : index
    %4 = vector.load %arg3[%c0_2, %c0_3] : memref<16x128xf32, #tpu.memory_space<vmem>>, vector<16x128xf32>
    %c0_4 = arith.constant 0 : index
    %c0_5 = arith.constant 0 : index
    %5 = vector.load %arg4[%c0_4, %c0_5] : memref<128x128xf32, #tpu.memory_space<vmem>>, vector<128x128xf32>
    %cst = arith.constant dense<0.000000e+00> : vector<16x128xf32>
    %6 = tpu.matmul %4, %5, %cst {dimension_numbers = #tpu.dot_dimension_numbers<[1], [0], [0], [1], [0, 0, 1, 1], [], []>} : vector<16x128xf32>, vector<128x128xf32>, vector<16x128xf32> -> vector<16x128xf32>
    %7 = arith.addf %3, %6 : vector<16x128xf32>
    %c0_6 = arith.constant 0 : index
    %c0_7 = arith.constant 0 : index
    %8 = vector.load %arg7[%c0_6, %c0_7] : memref<16x128xf32, #tpu.memory_space<vmem>>, vector<16x128xf32>
    tpu.vector_store %arg7[%c0_6, %c0_7], %7 {strides = array<i32>} : memref<16x128xf32, #tpu.memory_space<vmem>>, vector<16x128xf32>,
    %c0_i32_8 = arith.constant 0 : i32
    %9 = arith.cmpi eq, %arg2, %c0_i32_8 : i32
    %10 = arith.extui %9 : i1 to i32
    %c0_i32_9 = arith.constant 0 : i32
    %11 = arith.cmpi ne, %10, %c0_i32_9 : i32
    scf.if %11 {
      %c0_10 = arith.constant 0 : index
      %c0_11 = arith.constant 0 : index
      %12 = vector.load %arg7[%c0_10, %c0_11] : memref<16x128xf32, #tpu.memory_space<vmem>>, vector<16x128xf32>
      %c0_12 = arith.constant 0 : index
      %c0_13 = arith.constant 0 : index
      %13 = vector.load %arg5[%c0_12, %c0_13] : memref<1x128xf32, #tpu.memory_space<vmem>>, vector<1x128xf32>
      %14 = vector.broadcast %13 : vector<1x128xf32> to vector<16x128xf32>
      %15 = arith.addf %12, %14 : vector<16x128xf32>
      %cst_14 = arith.constant 0.000000e+00 : f32
      %16 = vector.broadcast %cst_14 : f32 to vector<16x128xf32>
      %17 = arith.maximumf %15, %16 : vector<16x128xf32>
      %c0_15 = arith.constant 0 : index
      %c0_16 = arith.constant 0 : index
      %18 = vector.load %arg6[%c0_15, %c0_16] : memref<16x128xf32, #tpu.memory_space<vmem>>, vector<16x128xf32>
      tpu.vector_store %arg6[%c0_15, %c0_16], %17 {strides = array<i32>} : memref<16x128xf32, #tpu.memory_space<vmem>>, vector<16x128xf32>,
    } else {
    }
    return
  }
  func.func @transform_0(%arg0: i32, %arg1: i32, %arg2: i32) -> (i32, i32) {
    %c0_i32 = arith.constant 0 : i32
    return %arg0, %arg2 : i32, i32
  }
  func.func @transform_1(%arg0: i32, %arg1: i32, %arg2: i32) -> (i32, i32) {
    %c0_i32 = arith.constant 0 : i32
    return %arg2, %arg1 : i32, i32
  }
  func.func @transform_2(%arg0: i32, %arg1: i32, %arg2: i32) -> (i32, i32) {
    %c0_i32 = arith.constant 0 : i32
    %c0_i32_0 = arith.constant 0 : i32
    return %c0_i32, %arg1 : i32, i32
  }
  func.func @transform_3(%arg0: i32, %arg1: i32, %arg2: i32) -> (i32, i32) {
    %c0_i32 = arith.constant 0 : i32
    return %arg0, %arg1 : i32, i32
  }
}

</mosaic_0001>

<llo_original>
// kernel: transformer_forward.42
$region0: #{transformer_forward.42}
  #allocation0 [shape = 'u32[]', space=smem, size = 0x4, offset = 0x4, fixed_abs, tag = 'smem constant byte address 0x4 - core index']
  #allocation1 [shape = 'u32[72,128]{1,0:T(1,128)}', space=vmem, size = 0x9000, scoped, tag = 'internal scratch']
  %s0 = inlined_call_operand.vmem [shape: f32[16,32], index: 0, kind: input, shape index: {}]
  %s1 = inlined_call_operand.vmem [shape: f32[16,32], index: 1, kind: input, shape index: {}]
  %s2 = inlined_call_operand.vmem [shape: f32[1,32], index: 2, kind: input, shape index: {}]
  %s3 = inlined_call_operand.vmem [shape: f32[1,32], index: 3, kind: input, shape index: {}]
  %s4 = inlined_call_operand.vmem [shape: f32[16,32], index: 4, kind: output, shape index: {}]
  %s5 = sld [smem:[#allocation0]]
  $region26: #{transformer_forward.42} parent=0
    _
  %s7 = ssub.s32 1, %s5
  %s8 = scalar_select 0, %s7, %s5
  // Predicated region
  $region2: #{transformer_forward.42} parent=0 // pred_check
    _
  $region3: #{transformer_forward.42} parent=0 // pred_check_branch
    %10 = sbr.rel (0) target = $region5
  $region4: #{transformer_forward.42} parent=0 // pred_region
    _
  $region5: #{transformer_forward.42} parent=0 // pred_fallthru
    _
  // Predicated region
  $region6: #{transformer_forward.42} parent=0 // pred_check
    _
  $region7: #{transformer_forward.42} parent=0 // pred_check_branch
    %12 = sbr.rel (0) target = $region9
  $region8: #{transformer_forward.42} parent=0 // pred_region
    _
  $region9: #{transformer_forward.42} parent=0 // pred_fallthru
    _
  // Predicated region
  $region10: #{transformer_forward.42} parent=0 // pred_check
    _
  $region11: #{transformer_forward.42} parent=0 // pred_check_branch
    %14 = sbr.rel (0) target = $region13
  $region12: #{transformer_forward.42} parent=0 // pred_region
    _
  $region13: #{transformer_forward.42} parent=0 // pred_fallthru
    _
  // Predicated region
  $region14: #{transformer_forward.42} parent=0 // pred_check
    _
  $region15: #{transformer_forward.42} parent=0 // pred_check_branch
    %16 = sbr.rel (0) target = $region17
  $region16: #{transformer_forward.42} parent=0 // pred_region
    _
  $region17: #{transformer_forward.42} parent=0 // pred_fallthru
    _
  %v17 = vld [vmem:[%s0] sm:$0xff]
  %v18 = vld [vmem:[%s0 + $0x8] sm:$0xff]
  %v19 = vld [vmem:[%s1] sm:$0xff]
  %v20 = vld [vmem:[%s1 + $0x8] sm:$0xff]
  %v21 = vadd.f32 %v17, %v19
  %v22 = vadd.f32 %v18, %v20
  %vm23 = vcmask 261120
  %v24 = vsel %vm23, %v21, 0.0
  %25 = vadd.xlane.f32.xlu0 %v24
  %v26 = vpop.xlane.xlu0 %25
  %v27 = vsel %vm23, %v22, 0.0
  %28 = vadd.xlane.f32.xlu0 %v27
  %v29 = vpop.xlane.xlu0 %28
  %v30 = vrcp.pop 32.0
  %v31 = vmul.f32 32.0, %v30
  %v32 = vsub.f32 1.0, %v31
  %v33 = vmul.f32 %v30, %v32
  %v34 = vadd.f32 %v30, %v33
  %vm35 = vweird.f32 %v30
  %v36 = vsel %vm35, %v30, %v34
  %v37 = vmul.f32 %v26, %v36
  %v38 = vmul.f32 %v29, %v36
  %v39 = vsub.f32 %v21, %v37
  %v40 = vsub.f32 %v22, %v38
  %v41 = vmul.f32 %v39, %v39
  %v42 = vmul.f32 %v40, %v40
  %v43 = vsel %vm23, %v41, 0.0
  %44 = vadd.xlane.f32.xlu0 %v43
  %v45 = vpop.xlane.xlu0 %44
  %v46 = vsel %vm23, %v42, 0.0
  %47 = vadd.xlane.f32.xlu0 %v46
  %v48 = vpop.xlane.xlu0 %47
  %v49 = vmul.f32 %v45, %v36
  %v50 = vmul.f32 %v48, %v36
  %v51 = vadd.f32 %v49, 1e-12
  %v52 = vadd.f32 %v50, 1e-12
  %v53 = vrsqrt.pop %v51
  %v54 = vmul.f32 %v53, %v51
  %v55 = vmul.f32 %v54, %v53
  %v56 = vmul.f32 0.5, %v55
  %v57 = vsub.f32 1.5, %v56
  %v58 = vmul.f32 %v53, %v57
  %vm59 = vweird.f32 %v51
  %vm60 = vweird.f32 %v53
  %vm61 = vmor %vm59, %vm60
  %v62 = vsel %vm61, %v53, %v58
  %v63 = vrsqrt.pop %v52
  %v64 = vmul.f32 %v63, %v52
  %v65 = vmul.f32 %v64, %v63
  %v66 = vmul.f32 0.5, %v65
  %v67 = vsub.f32 1.5, %v66
  %v68 = vmul.f32 %v63, %v67
  %vm69 = vweird.f32 %v52
  %vm70 = vweird.f32 %v63
  %vm71 = vmor %vm69, %vm70
  %v72 = vsel %vm71, %v63, %v68
  %v73 = vmul.f32 %v39, %v62
  %v74 = vmul.f32 %v40, %v72
  %v75 = vld [vmem:[%s2] sm:$0x1]
  %v77 = vperm.slane %v75, 0
  %v79 = vmul.f32 %v73, %v77
  %v80 = vmul.f32 %v74, %v77
  %v81 = vld [vmem:[%s3] sm:$0x1]
  %v83 = vperm.slane %v81, 0
  %v85 = vadd.f32 %v79, %v83
  %v86 = vadd.f32 %v80, %v83
  %87 = vst.msk [vmem:[%s4] sm:$0xff] %vm23, %v85
  %88 = vst.msk [vmem:[%s4 + $0x8] sm:$0xff] %vm23, %v86
  // Predicated region
  $region18: #{transformer_forward.42} parent=0 // pred_check
    _
  $region19: #{transformer_forward.42} parent=0 // pred_check_branch
    %90 = sbr.rel (0) target = $region21
  $region20: #{transformer_forward.42} parent=0 // pred_region
    _
  $region21: #{transformer_forward.42} parent=0 // pred_fallthru
    _
  // Predicated region
  $region22: #{transformer_forward.42} parent=0 // pred_check
    _
  $region23: #{transformer_forward.42} parent=0 // pred_check_branch
    %92 = sbr.rel (0) target = $region25
  $region24: #{transformer_forward.42} parent=0 // pred_region
    _
  $region25: #{transformer_forward.42} parent=0 // pred_fallthru
    _

// kernel: transformer_forward.39
$region0: #{transformer_forward.39}
  #allocation0 [shape = 'u32[]', space=smem, size = 0x4, offset = 0x4, fixed_abs, tag = 'smem constant byte address 0x4 - core index']
  #allocation1 [shape = 'u32[72,128]{1,0:T(1,128)}', space=vmem, size = 0x9000, scoped, tag = 'internal scratch']
  #allocation2 [shape = 'f32[16,128]{1,0:T(8,128)}', space=vmem, size = 0x2000, scoped, tag = 'scratch operand']
  %s0 = inlined_call_operand.vmem [shape: f32[16,128], index: 0, kind: input, shape index: {}]
  %s1 = inlined_call_operand.vmem [shape: f32[128,128], index: 1, kind: input, shape index: {}]
  %s2 = inlined_call_operand.vmem [shape: f32[1,128], index: 2, kind: input, shape index: {}]
  %s3 = inlined_call_operand.vmem [shape: f32[16,128], index: 3, kind: output, shape index: {}]
  %s4 = sld [smem:[#allocation0]]
  $region30: #{transformer_forward.39} parent=0
    _
  %s6 = ssub.s32 1, %s4
  %s7 = scalar_select 0, %s6, %s4
  // Predicated region
  $region2: #{transformer_forward.39} parent=0 // pred_check
    _
  $region3: #{transformer_forward.39} parent=0 // pred_check_branch
    %9 = sbr.rel (0) target = $region5
  $region4: #{transformer_forward.39} parent=0 // pred_region
    _
  $region5: #{transformer_forward.39} parent=0 // pred_fallthru
    _
  // Predicated region
  $region6: #{transformer_forward.39} parent=0 // pred_check
    _
  $region7: #{transformer_forward.39} parent=0 // pred_check_branch
    %11 = sbr.rel (0) target = $region9
  $region8: #{transformer_forward.39} parent=0 // pred_region
    _
  $region9: #{transformer_forward.39} parent=0 // pred_fallthru
    _
  // Predicated region
  $region10: #{transformer_forward.39} parent=0 // pred_check
    _
  $region11: #{transformer_forward.39} parent=0 // pred_check_branch
    %13 = sbr.rel (0) target = $region13
  $region12: #{transformer_forward.39} parent=0 // pred_region
    _
  $region13: #{transformer_forward.39} parent=0 // pred_fallthru
    _
  %p14 = scmp.eq.s32.totalorder 0, 0
  // Predicated region
  $region14: #{transformer_forward.39} parent=0 // pred_check
    %p15 = pneg %p14
  $region15: #{transformer_forward.39} parent=0 // pred_check_branch
    %17 = sbr.rel (%p15) target = $region17
  $region16: #{transformer_forward.39} parent=0 // pred_region
    %18 = vst [vmem:[#allocation2] sm:$0xff] 0.0
    %19 = vst [vmem:[#allocation2 + $0x8] sm:$0xff] 0.0
  $region17: #{transformer_forward.39} parent=0 // pred_fallthru
    _
  %v20 = vld [vmem:[#allocation2] sm:$0xff]
  %v21 = vld [vmem:[#allocation2 + $0x8] sm:$0xff]
  %v22 = vld [vmem:[%s0] sm:$0xff]
  %v23 = vld [vmem:[%s0 + $0x8] sm:$0xff]
  %v24 = vld [vmem:[%s1] sm:$0xff]
  %v25 = vld [vmem:[%s1 + $0x8] sm:$0xff]
  %v26 = vld [vmem:[%s1 + $0x10] sm:$0xff]
  %v27 = vld [vmem:[%s1 + $0x18] sm:$0xff]
  %v28 = vld [vmem:[%s1 + $0x20] sm:$0xff]
  %v29 = vld [vmem:[%s1 + $0x28] sm:$0xff]
  %v30 = vld [vmem:[%s1 + $0x30] sm:$0xff]
  %v31 = vld [vmem:[%s1 + $0x38] sm:$0xff]
  %v32 = vld [vmem:[%s1 + $0x40] sm:$0xff]
  %v33 = vld [vmem:[%s1 + $0x48] sm:$0xff]
  %v34 = vld [vmem:[%s1 + $0x50] sm:$0xff]
  %v35 = vld [vmem:[%s1 + $0x58] sm:$0xff]
  %v36 = vld [vmem:[%s1 + $0x60] sm:$0xff]
  %v37 = vld [vmem:[%s1 + $0x68] sm:$0xff]
  %v38 = vld [vmem:[%s1 + $0x70] sm:$0xff]
  %v39 = vld [vmem:[%s1 + $0x78] sm:$0xff]
  %40 = vmatpush.msra.mxu0 %v39
  %41 = vmatpush.msra.mxu0 %v38
  %42 = vmatpush.msra.mxu0 %v37
  %43 = vmatpush.msra.mxu0 %v36
  %44 = vmatpush.msra.mxu0 %v35
  %45 = vmatpush.msra.mxu0 %v34
  %46 = vmatpush.msra.mxu0 %v33
  %47 = vmatpush.msra.mxu0 %v32
  %48 = vmatpush.msra.mxu0 %v31
  %49 = vmatpush.msra.mxu0 %v30
  %50 = vmatpush.msra.mxu0 %v29
  %51 = vmatpush.msra.mxu0 %v28
  %52 = vmatpush.msra.mxu0 %v27
  %53 = vmatpush.msra.mxu0 %v26
  %54 = vmatpush.msra.mxu0 %v25
  %55 = vmatpush.msra.mxu0 %v24
  %56 = vmatmul.f32.gmra.mxu0 %v22
  %v57 = vpop.f32.mrf.mxu0
  %v58 = vadd.f32 0.0, %v57
  %59 = vmatmul.f32.gmra.mxu0 %v23
  %v60 = vpop.f32.mrf.mxu0
  %v61 = vadd.f32 0.0, %v60
  %62 = vdwg.mxu0
  %v63 = vadd.f32 %v20, %v58
  %v64 = vadd.f32 %v21, %v61
  %65 = vst [vmem:[#allocation2] sm:$0xff] %v63
  %66 = vst [vmem:[#allocation2 + $0x8] sm:$0xff] %v64
  // Predicated region
  $region18: #{transformer_forward.39} parent=0 // pred_check
    %p67 = pneg %p14
  $region19: #{transformer_forward.39} parent=0 // pred_check_branch
    %69 = sbr.rel (%p67) target = $region21
  $region20: #{transformer_forward.39} parent=0 // pred_region
    %v70 = vld [vmem:[#allocation2] sm:$0xff]
    %v71 = vld [vmem:[#allocation2 + $0x8] sm:$0xff]
    %v72 = vld [vmem:[%s2] sm:$0x1]
    %v74 = vperm.slane %v72, 0
    %v76 = vadd.f32 %v70, %v74
    %v77 = vadd.f32 %v71, %v74
    %78 = vst [vmem:[%s3] sm:$0xff] %v76
    %79 = vst [vmem:[%s3 + $0x8] sm:$0xff] %v77
  $region21: #{transformer_forward.39} parent=0 // pred_fallthru
    _
  // Predicated region
  $region22: #{transformer_forward.39} parent=0 // pred_check
    _
  $region23: #{transformer_forward.39} parent=0 // pred_check_branch
    %81 = sbr.rel (0) target = $region25
  $region24: #{transformer_forward.39} parent=0 // pred_region
    _
  $region25: #{transformer_forward.39} parent=0 // pred_fallthru
    _
  // Predicated region
  $region26: #{transformer_forward.39} parent=0 // pred_check
    _
  $region27: #{transformer_forward.39} parent=0 // pred_check_branch
    %83 = sbr.rel (0) target = $region29
  $region28: #{transformer_forward.39} parent=0 // pred_region
    _
  $region29: #{transformer_forward.39} parent=0 // pred_fallthru
    _

// kernel: transformer_forward.43
$region0: #{transformer_forward.43}
  #allocation0 [shape = 'u32[]', space=smem, size = 0x4, offset = 0x4, fixed_abs, tag = 'smem constant byte address 0x4 - core index']
  #allocation1 [shape = 'u32[72,128]{1,0:T(1,128)}', space=vmem, size = 0x9000, scoped, tag = 'internal scratch']
  #allocation2 [shape = 'f32[16,128]{1,0:T(8,128)}', space=vmem, size = 0x2000, scoped, tag = 'scratch operand']
  %s0 = inlined_call_operand.vmem [shape: f32[16,128], index: 0, kind: input, shape index: {}]
  %s1 = inlined_call_operand.vmem [shape: f32[128,128], index: 1, kind: input, shape index: {}]
  %s2 = inlined_call_operand.vmem [shape: f32[1,128], index: 2, kind: input, shape index: {}]
  %s3 = inlined_call_operand.vmem [shape: f32[16,128], index: 3, kind: output, shape index: {}]
  %s4 = sld [smem:[#allocation0]]
  $region30: #{transformer_forward.43} parent=0
    _
  %s6 = ssub.s32 1, %s4
  %s7 = scalar_select 0, %s6, %s4
  // Predicated region
  $region2: #{transformer_forward.43} parent=0 // pred_check
    _
  $region3: #{transformer_forward.43} parent=0 // pred_check_branch
    %9 = sbr.rel (0) target = $region5
  $region4: #{transformer_forward.43} parent=0 // pred_region
    _
  $region5: #{transformer_forward.43} parent=0 // pred_fallthru
    _
  // Predicated region
  $region6: #{transformer_forward.43} parent=0 // pred_check
    _
  $region7: #{transformer_forward.43} parent=0 // pred_check_branch
    %11 = sbr.rel (0) target = $region9
  $region8: #{transformer_forward.43} parent=0 // pred_region
    _
  $region9: #{transformer_forward.43} parent=0 // pred_fallthru
    _
  // Predicated region
  $region10: #{transformer_forward.43} parent=0 // pred_check
    _
  $region11: #{transformer_forward.43} parent=0 // pred_check_branch
    %13 = sbr.rel (0) target = $region13
  $region12: #{transformer_forward.43} parent=0 // pred_region
    _
  $region13: #{transformer_forward.43} parent=0 // pred_fallthru
    _
  %p14 = scmp.eq.s32.totalorder 0, 0
  // Predicated region
  $region14: #{transformer_forward.43} parent=0 // pred_check
    %p15 = pneg %p14
  $region15: #{transformer_forward.43} parent=0 // pred_check_branch
    %17 = sbr.rel (%p15) target = $region17
  $region16: #{transformer_forward.43} parent=0 // pred_region
    %18 = vst [vmem:[#allocation2] sm:$0xff] 0.0
    %19 = vst [vmem:[#allocation2 + $0x8] sm:$0xff] 0.0
  $region17: #{transformer_forward.43} parent=0 // pred_fallthru
    _
  %v20 = vld [vmem:[#allocation2] sm:$0xff]
  %v21 = vld [vmem:[#allocation2 + $0x8] sm:$0xff]
  %v22 = vld [vmem:[%s0] sm:$0xff]
  %v23 = vld [vmem:[%s0 + $0x8] sm:$0xff]
  %v24 = vld [vmem:[%s1] sm:$0xff]
  %v25 = vld [vmem:[%s1 + $0x8] sm:$0xff]
  %v26 = vld [vmem:[%s1 + $0x10] sm:$0xff]
  %v27 = vld [vmem:[%s1 + $0x18] sm:$0xff]
  %v28 = vld [vmem:[%s1 + $0x20] sm:$0xff]
  %v29 = vld [vmem:[%s1 + $0x28] sm:$0xff]
  %v30 = vld [vmem:[%s1 + $0x30] sm:$0xff]
  %v31 = vld [vmem:[%s1 + $0x38] sm:$0xff]
  %v32 = vld [vmem:[%s1 + $0x40] sm:$0xff]
  %v33 = vld [vmem:[%s1 + $0x48] sm:$0xff]
  %v34 = vld [vmem:[%s1 + $0x50] sm:$0xff]
  %v35 = vld [vmem:[%s1 + $0x58] sm:$0xff]
  %v36 = vld [vmem:[%s1 + $0x60] sm:$0xff]
  %v37 = vld [vmem:[%s1 + $0x68] sm:$0xff]
  %v38 = vld [vmem:[%s1 + $0x70] sm:$0xff]
  %v39 = vld [vmem:[%s1 + $0x78] sm:$0xff]
  %40 = vmatpush.msra.mxu0 %v39
  %41 = vmatpush.msra.mxu0 %v38
  %42 = vmatpush.msra.mxu0 %v37
  %43 = vmatpush.msra.mxu0 %v36
  %44 = vmatpush.msra.mxu0 %v35
  %45 = vmatpush.msra.mxu0 %v34
  %46 = vmatpush.msra.mxu0 %v33
  %47 = vmatpush.msra.mxu0 %v32
  %48 = vmatpush.msra.mxu0 %v31
  %49 = vmatpush.msra.mxu0 %v30
  %50 = vmatpush.msra.mxu0 %v29
  %51 = vmatpush.msra.mxu0 %v28
  %52 = vmatpush.msra.mxu0 %v27
  %53 = vmatpush.msra.mxu0 %v26
  %54 = vmatpush.msra.mxu0 %v25
  %55 = vmatpush.msra.mxu0 %v24
  %56 = vmatmul.f32.gmra.mxu0 %v22
  %v57 = vpop.f32.mrf.mxu0
  %v58 = vadd.f32 0.0, %v57
  %59 = vmatmul.f32.gmra.mxu0 %v23
  %v60 = vpop.f32.mrf.mxu0
  %v61 = vadd.f32 0.0, %v60
  %62 = vdwg.mxu0
  %v63 = vadd.f32 %v20, %v58
  %v64 = vadd.f32 %v21, %v61
  %65 = vst [vmem:[#allocation2] sm:$0xff] %v63
  %66 = vst [vmem:[#allocation2 + $0x8] sm:$0xff] %v64
  // Predicated region
  $region18: #{transformer_forward.43} parent=0 // pred_check
    %p67 = pneg %p14
  $region19: #{transformer_forward.43} parent=0 // pred_check_branch
    %69 = sbr.rel (%p67) target = $region21
  $region20: #{transformer_forward.43} parent=0 // pred_region
    %v70 = vld [vmem:[#allocation2] sm:$0xff]
    %v71 = vld [vmem:[#allocation2 + $0x8] sm:$0xff]
    %v72 = vld [vmem:[%s2] sm:$0x1]
    %v74 = vperm.slane %v72, 0
    %v76 = vadd.f32 %v70, %v74
    %v77 = vadd.f32 %v71, %v74
    %v78 = vmax.f32 %v76, 0.0
    %v79 = vmax.f32 %v77, 0.0
    %80 = vst [vmem:[%s3] sm:$0xff] %v78
    %81 = vst [vmem:[%s3 + $0x8] sm:$0xff] %v79
  $region21: #{transformer_forward.43} parent=0 // pred_fallthru
    _
  // Predicated region
  $region22: #{transformer_forward.43} parent=0 // pred_check
    _
  $region23: #{transformer_forward.43} parent=0 // pred_check_branch
    %83 = sbr.rel (0) target = $region25
  $region24: #{transformer_forward.43} parent=0 // pred_region
    _
  $region25: #{transformer_forward.43} parent=0 // pred_fallthru
    _
  // Predicated region
  $region26: #{transformer_forward.43} parent=0 // pred_check
    _
  $region27: #{transformer_forward.43} parent=0 // pred_check_branch
    %85 = sbr.rel (0) target = $region29
  $region28: #{transformer_forward.43} parent=0 // pred_region
    _
  $region29: #{transformer_forward.43} parent=0 // pred_fallthru
    _

// kernel: transformer_forward.40
$region0: #{transformer_forward.40}
  #allocation0 [shape = 'u32[]', space=smem, size = 0x4, offset = 0x4, fixed_abs, tag = 'smem constant byte address 0x4 - core index']
  #allocation1 [shape = 'u32[72,128]{1,0:T(1,128)}', space=vmem, size = 0x9000, scoped, tag = 'internal scratch']
  %s0 = inlined_call_operand.vmem [shape: f32[2,8,32], index: 0, kind: input, shape index: {}]
  %s1 = inlined_call_operand.vmem [shape: f32[2,8,32], index: 1, kind: input, shape index: {}]
  %s2 = inlined_call_operand.vmem [shape: f32[2,8,32], index: 2, kind: input, shape index: {}]
  %s3 = inlined_call_operand.vmem [shape: f32[2,8,8], index: 3, kind: input, shape index: {}]
  %s4 = inlined_call_operand.vmem [shape: f32[2,8,32], index: 4, kind: output, shape index: {}]
  %s5 = sld [smem:[#allocation0]]
  $region49: #{transformer_forward.40} parent=0
    _
  %s7 = ssub.s32 1, %s5
  %s8 = scalar_select 0, %s7, %s5
  loop: start=0, step=1, limit=4
  $region2: #{transformer_forward.40} parent=0 // loop_pre_header
    _
  $region3: #{transformer_forward.40} parent=0 // loop_header
    %s10 = sphi 0, %s14
    %p11 = scmp.ge.s32.totalorder %s10, 4
    %s20 = sphi 0, %s22
    %s23 = sphi 0, %s20
    %s24 = sphi 0, %s23
    %s40 = sphi 0, %s24
    %s46 = sphi 0, %s48
    %s49 = sphi 0, %s46
    %s50 = sphi 0, %s49
    %s66 = sphi 0, %s50
    %s72 = sphi 0, %s74
    %s75 = sphi 0, %s72
    %s76 = sphi 0, %s75
    %s92 = sphi 0, %s76
    %s98 = sphi 0, %s100
    %s101 = sphi 0, %s98
    %s102 = sphi 0, %s101
    %s118 = sphi 0, %s102
    %s124 = sphi 0, %s126
    %s127 = sphi 0, %s124
    %s128 = sphi 0, %s127
    %s144 = sphi 0, %s128
  $region4: #{transformer_forward.40} parent=0 // loop_header_branch
    %13 = sbr.rel (%p11) target = $region8
  $region5: #{transformer_forward.40} parent=0 // loop_body
    %s15 = ssub.s32 %s10, 1
    %s16 = ssub.s32 %s10, 2
    %s17 = sadd.s32 %s10, 1
    %s18 = ssub.s32 %s10, %s17
    %p19 = scmp.eq.s32.totalorder %s18, 0
    %s21 = sadd.s32 %s20, 1
    %s22 = scalar_select %p19, %s20, %s21
    %p25 = pneg %p19
    %p26 = scmp.eq.s32.totalorder %s10, 1
    %p27 = por %p25, %p26
    %p28 = scmp.ne.s32.totalorder %s20, %s23
    %p29 = scmp.eq.s32.totalorder %s10, 0
    %p30 = por %p28, %p29
    %p31 = scmp.ne.s32.totalorder %s20, %s23
    %p32 = scmp.eq.s32.totalorder %s15, 1
    %p33 = por %p31, %p32
    %p34 = scmp.ne.s32.totalorder %s23, %s24
    %p35 = scmp.eq.s32.totalorder %s15, 0
    %p36 = por %p34, %p35
    %p37 = scmp.ne.s32.totalorder %s23, %s24
    %p38 = scmp.eq.s32.totalorder %s16, 1
    %p39 = por %p37, %p38
    %p41 = scmp.ne.s32.totalorder %s24, %s40
    %p42 = scmp.eq.s32.totalorder %s16, 0
    %p43 = por %p41, %p42
    %s44 = ssub.s32 %s10, %s17
    %p45 = scmp.eq.s32.totalorder %s44, 0
    %s47 = sadd.s32 %s46, 1
    %s48 = scalar_select %p45, %s46, %s47
    %p51 = pneg %p45
    %p52 = scmp.eq.s32.totalorder %s10, 1
    %p53 = por %p51, %p52
    %p54 = scmp.ne.s32.totalorder %s46, %s49
    %p55 = scmp.eq.s32.totalorder %s10, 0
    %p56 = por %p54, %p55
    %p57 = scmp.ne.s32.totalorder %s46, %s49
    %p58 = scmp.eq.s32.totalorder %s15, 1
    %p59 = por %p57, %p58
    %p60 = scmp.ne.s32.totalorder %s49, %s50
    %p61 = scmp.eq.s32.totalorder %s15, 0
    %p62 = por %p60, %p61
    %p63 = scmp.ne.s32.totalorder %s49, %s50
    %p64 = scmp.eq.s32.totalorder %s16, 1
    %p65 = por %p63, %p64
    %p67 = scmp.ne.s32.totalorder %s50, %s66
    %p68 = scmp.eq.s32.totalorder %s16, 0
    %p69 = por %p67, %p68
    %s70 = ssub.s32 %s10, %s17
    %p71 = scmp.eq.s32.totalorder %s70, 0
    %s73 = sadd.s32 %s72, 1
    %s74 = scalar_select %p71, %s72, %s73
    %p77 = pneg %p71
    %p78 = scmp.eq.s32.totalorder %s10, 1
    %p79 = por %p77, %p78
    %p80 = scmp.ne.s32.totalorder %s72, %s75
    %p81 = scmp.eq.s32.totalorder %s10, 0
    %p82 = por %p80, %p81
    %p83 = scmp.ne.s32.totalorder %s72, %s75
    %p84 = scmp.eq.s32.totalorder %s15, 1
    %p85 = por %p83, %p84
    %p86 = scmp.ne.s32.totalorder %s75, %s76
    %p87 = scmp.eq.s32.totalorder %s15, 0
    %p88 = por %p86, %p87
    %p89 = scmp.ne.s32.totalorder %s75, %s76
    %p90 = scmp.eq.s32.totalorder %s16, 1
    %p91 = por %p89, %p90
    %p93 = scmp.ne.s32.totalorder %s76, %s92
    %p94 = scmp.eq.s32.totalorder %s16, 0
    %p95 = por %p93, %p94
    %s96 = ssub.s32 %s10, %s17
    %p97 = scmp.eq.s32.totalorder %s96, 0
    %s99 = sadd.s32 %s98, 1
    %s100 = scalar_select %p97, %s98, %s99
    %p103 = pneg %p97
    %p104 = scmp.eq.s32.totalorder %s10, 1
    %p105 = por %p103, %p104
    %p106 = scmp.ne.s32.totalorder %s98, %s101
    %p107 = scmp.eq.s32.totalorder %s10, 0
    %p108 = por %p106, %p107
    %p109 = scmp.ne.s32.totalorder %s98, %s101
    %p110 = scmp.eq.s32.totalorder %s15, 1
    %p111 = por %p109, %p110
    %p112 = scmp.ne.s32.totalorder %s101, %s102
    %p113 = scmp.eq.s32.totalorder %s15, 0
    %p114 = por %p112, %p113
    %p115 = scmp.ne.s32.totalorder %s101, %s102
    %p116 = scmp.eq.s32.totalorder %s16, 1
    %p117 = por %p115, %p116
    %p119 = scmp.ne.s32.totalorder %s102, %s118
    %p120 = scmp.eq.s32.totalorder %s16, 0
    %p121 = por %p119, %p120
    %s122 = ssub.s32 %s10, %s17
    %p123 = scmp.eq.s32.totalorder %s122, 0
    %s125 = sadd.s32 %s124, 1
    %s126 = scalar_select %p123, %s124, %s125
    %p129 = pneg %p123
    %p130 = scmp.eq.s32.totalorder %s10, 1
    %p131 = por %p129, %p130
    %p132 = scmp.ne.s32.totalorder %s124, %s127
    %p133 = scmp.eq.s32.totalorder %s10, 0
    %p134 = por %p132, %p133
    %p135 = scmp.ne.s32.totalorder %s124, %s127
    %p136 = scmp.eq.s32.totalorder %s15, 1
    %p137 = por %p135, %p136
    %p138 = scmp.ne.s32.totalorder %s127, %s128
    %p139 = scmp.eq.s32.totalorder %s15, 0
    %p140 = por %p138, %p139
    %p141 = scmp.ne.s32.totalorder %s127, %s128
    %p142 = scmp.eq.s32.totalorder %s16, 1
    %p143 = por %p141, %p142
    %p145 = scmp.ne.s32.totalorder %s128, %s144
    %p146 = scmp.eq.s32.totalorder %s16, 0
    %p147 = por %p145, %p146
    %p148 = scmp.le.s32.totalorder 1, %s10
    %p149 = scmp.lt.s32.totalorder %s10, 3
    %p150 = pnand %p148, %p149
    %p151 = pneg %p150
    // Predicated region
    $region9: #{transformer_forward.40} parent=5 // pred_check
      _
    $region10: #{transformer_forward.40} parent=5 // pred_check_branch
      %153 = sbr.rel (%p150) target = $region12
    $region11: #{transformer_forward.40} parent=5 // pred_region
      %s154 = ssub.s32 %s10, 1
    $region12: #{transformer_forward.40} parent=5 // pred_fallthru
      _
    %p155 = scmp.lt.s32.totalorder %s10, 2
    // Predicated region
    $region13: #{transformer_forward.40} parent=5 // pred_check
      %p156 = pneg %p155
    $region14: #{transformer_forward.40} parent=5 // pred_check_branch
      %158 = sbr.rel (%p156) target = $region16
    $region15: #{transformer_forward.40} parent=5 // pred_region
      // Predicated region
      $region17: #{transformer_forward.40} parent=15 // pred_check
        %p159 = pneg %p30
      $region18: #{transformer_forward.40} parent=15 // pred_check_branch
        %161 = sbr.rel (%p159) target = $region20
      $region19: #{transformer_forward.40} parent=15 // pred_region
        %p162 = scmp.lt.s32.totalorder %s10, 1
        %s163 = scalar_select %p162, %s10, 1
        %s164 = smul.addr %s163, 8
        %s165 = scalar_lea.vmem %s0, %s164
      $region20: #{transformer_forward.40} parent=15 // pred_fallthru
        _
      // Predicated region
      $region21: #{transformer_forward.40} parent=15 // pred_check
        %p166 = pneg %p56
      $region22: #{transformer_forward.40} parent=15 // pred_check_branch
        %168 = sbr.rel (%p166) target = $region24
      $region23: #{transformer_forward.40} parent=15 // pred_region
        %p169 = scmp.lt.s32.totalorder %s10, 1
        %s170 = scalar_select %p169, %s10, 1
        %s171 = smul.addr %s170, 8
        %s172 = scalar_lea.vmem %s1, %s171
      $region24: #{transformer_forward.40} parent=15 // pred_fallthru
        _
      // Predicated region
      $region25: #{transformer_forward.40} parent=15 // pred_check
        %p173 = pneg %p82
      $region26: #{transformer_forward.40} parent=15 // pred_check_branch
        %175 = sbr.rel (%p173) target = $region28
      $region27: #{transformer_forward.40} parent=15 // pred_region
        %p176 = scmp.lt.s32.totalorder %s10, 1
        %s177 = scalar_select %p176, %s10, 1
        %s178 = smul.addr %s177, 8
        %s179 = scalar_lea.vmem %s2, %s178
      $region28: #{transformer_forward.40} parent=15 // pred_fallthru
        _
      // Predicated region
      $region29: #{transformer_forward.40} parent=15 // pred_check
        %p180 = pneg %p108
      $region30: #{transformer_forward.40} parent=15 // pred_check_branch
        %182 = sbr.rel (%p180) target = $region32
      $region31: #{transformer_forward.40} parent=15 // pred_region
        %p183 = scmp.lt.s32.totalorder %s10, 1
        %s184 = scalar_select %p183, %s10, 1
        %s185 = smul.addr %s184, 8
        %s186 = scalar_lea.vmem %s3, %s185
      $region32: #{transformer_forward.40} parent=15 // pred_fallthru
        _
    $region16: #{transformer_forward.40} parent=5 // pred_fallthru
      _
    %p187 = scmp.le.s32.totalorder 1, %s10
    %p188 = scmp.lt.s32.totalorder %s10, 3
    %p189 = pnand %p187, %p188
    %p190 = pneg %p189
    // Predicated region
    $region33: #{transformer_forward.40} parent=5 // pred_check
      _
    $region34: #{transformer_forward.40} parent=5 // pred_check_branch
      %192 = sbr.rel (%p189) target = $region36
    $region35: #{transformer_forward.40} parent=5 // pred_region
      %s193 = ssub.s32 %s10, 1
      %p194 = scmp.lt.s32.totalorder %s15, 1
      %s195 = scalar_select %p194, %s15, 1
      %s196 = smul.addr %s195, 8
      %s197 = scalar_lea.vmem %s0, %s196
      %p198 = pneg %p36
      %p199 = pneg %p33
      %p200 = scmp.lt.s32.totalorder %s15, 1
      %s201 = scalar_select %p200, %s15, 1
      %s202 = smul.addr %s201, 8
      %s203 = scalar_lea.vmem %s1, %s202
      %p204 = pneg %p62
      %p205 = pneg %p59
      %p206 = scmp.lt.s32.totalorder %s15, 1
      %s207 = scalar_select %p206, %s15, 1
      %s208 = smul.addr %s207, 8
      %s209 = scalar_lea.vmem %s2, %s208
      %p210 = pneg %p88
      %p211 = pneg %p85
      %p212 = scmp.lt.s32.totalorder %s15, 1
      %s213 = scalar_select %p212, %s15, 1
      %s214 = smul.addr %s213, 8
      %s215 = scalar_lea.vmem %s3, %s214
      %p216 = pneg %p114
      %p217 = pneg %p111
      %p218 = pneg %p140
      %p219 = pneg %p137
      %p220 = scmp.lt.s32.totalorder %s15, 1
      %s221 = scalar_select %p220, %s15, 1
      %s222 = smul.addr %s221, 8
      %s223 = scalar_lea.vmem %s4, %s222
      %p224 = scmp.lt.s32.totalorder %s15, 1
      %s225 = scalar_select %p224, %s15, 1
      %s226 = smul.addr %s225, 8
      %s227 = scalar_lea.vmem %s0, %s226
      %p228 = scmp.lt.s32.totalorder %s15, 1
      %s229 = scalar_select %p228, %s15, 1
      %s230 = smul.addr %s229, 8
      %s231 = scalar_lea.vmem %s1, %s230
      %p232 = scmp.lt.s32.totalorder %s15, 1
      %s233 = scalar_select %p232, %s15, 1
      %s234 = smul.addr %s233, 8
      %s235 = scalar_lea.vmem %s2, %s234
      %p236 = scmp.lt.s32.totalorder %s15, 1
      %s237 = scalar_select %p236, %s15, 1
      %s238 = smul.addr %s237, 8
      %s239 = scalar_lea.vmem %s3, %s238
      %p240 = scmp.lt.s32.totalorder %s15, 1
      %s241 = scalar_select %p240, %s15, 1
      %s242 = smul.addr %s241, 8
      %s243 = scalar_lea.vmem %s4, %s242
      %v244 = vld [vmem:[%s227] sm:$0xff]
      %v245 = vld [vmem:[%s231] sm:$0xff]
      %v246 = vld [vmem:[%s235] sm:$0xff]
      %v247 = vld [vmem:[%s239] sm:$0xff]
      %vm248 = vcmask 64512
      %v250 = vsel %vm248, %v244, 0
      %v253 = vsel %vm248, %v245, 0
      %255 = vmatpush.xpose.msra.mxu0 0.0
      %256 = vmatpush.xpose.msra.mxu0 0.0
      %257 = vmatpush.xpose.msra.mxu0 0.0
      %258 = vmatpush.xpose.msra.mxu0 0.0
      %259 = vmatpush.xpose.msra.mxu0 0.0
      %260 = vmatpush.xpose.msra.mxu0 0.0
      %261 = vmatpush.xpose.msra.mxu0 0.0
      %262 = vmatpush.xpose.msra.mxu0 0.0
      %263 = vmatpush.xpose.msra.mxu0 0.0
      %264 = vmatpush.xpose.msra.mxu0 0.0
      %265 = vmatpush.xpose.msra.mxu0 0.0
      %266 = vmatpush.xpose.msra.mxu0 0.0
      %267 = vmatpush.xpose.msra.mxu0 0.0
      %268 = vmatpush.xpose.msra.mxu0 0.0
      %269 = vmatpush.xpose.msra.mxu0 0.0
      %270 = vmatpush.xpose.msra.mxu0 %v253
      %271 = vmatmul.f32.gmra.mxu0 %v250
      %v272 = vpop.f32.mrf.mxu0
      %v273 = vadd.f32 0.0, %v272
      %274 = vdwg.mxu0
      %v275 = vmul.f32 %v273, 0.35355338
      %v276 = vadd.f32 %v275, %v247
      %v277 = vsel %vm248, %v276, -inf
      %278 = vmax.xlane.f32.xlu0 %v277
      %v279 = vpop.xlane.xlu0 %278
      %v280 = vsub.f32 %v276, %v279
      %v281 = vmul.f32 %v280, 1.442695
      %v282 = vpow.pop %v281
      %v283 = vsel %vm248, %v282, 0.0
      %284 = vadd.xlane.f32.xlu0 %v283
      %v285 = vpop.xlane.xlu0 %284
      %v286 = vrcp.pop %v285
      %v287 = vmul.f32 %v282, %v286
      %v289 = vsel %vm248, %v287, 0
      %291 = vmatpush.msra.mxu0 0.0
      %292 = vmatpush.msra.mxu0 0.0
      %293 = vmatpush.msra.mxu0 0.0
      %294 = vmatpush.msra.mxu0 0.0
      %295 = vmatpush.msra.mxu0 0.0
      %296 = vmatpush.msra.mxu0 0.0
      %297 = vmatpush.msra.mxu0 0.0
      %298 = vmatpush.msra.mxu0 0.0
      %299 = vmatpush.msra.mxu0 0.0
      %300 = vmatpush.msra.mxu0 0.0
      %301 = vmatpush.msra.mxu0 0.0
      %302 = vmatpush.msra.mxu0 0.0
      %303 = vmatpush.msra.mxu0 0.0
      %304 = vmatpush.msra.mxu0 0.0
      %305 = vmatpush.msra.mxu0 0.0
      %306 = vmatpush.msra.mxu0 %v246
      %307 = vmatmul.f32.gmra.mxu0 %v289
      %v308 = vpop.f32.mrf.mxu0
      %v309 = vadd.f32 0.0, %v308
      %310 = vdwg.mxu0
      %311 = vrot.lane.b32.xlu0 %v244, 120
      %v312 = vpop.permute.xlu0 %311
      %313 = vrot.lane.b32.xlu0 %v245, 120
      %v314 = vpop.permute.xlu0 %313
      %v315 = vsel %vm248, %v312, 0
      %v317 = vsel %vm248, %v314, 0
      %319 = vmatpush.xpose.msra.mxu0 0.0
      %320 = vmatpush.xpose.msra.mxu0 0.0
      %321 = vmatpush.xpose.msra.mxu0 0.0
      %322 = vmatpush.xpose.msra.mxu0 0.0
      %323 = vmatpush.xpose.msra.mxu0 0.0
      %324 = vmatpush.xpose.msra.mxu0 0.0
      %325 = vmatpush.xpose.msra.mxu0 0.0
      %326 = vmatpush.xpose.msra.mxu0 0.0
      %327 = vmatpush.xpose.msra.mxu0 0.0
      %328 = vmatpush.xpose.msra.mxu0 0.0
      %329 = vmatpush.xpose.msra.mxu0 0.0
      %330 = vmatpush.xpose.msra.mxu0 0.0
      %331 = vmatpush.xpose.msra.mxu0 0.0
      %332 = vmatpush.xpose.msra.mxu0 0.0
      %333 = vmatpush.xpose.msra.mxu0 0.0
      %334 = vmatpush.xpose.msra.mxu0 %v317
      %335 = vmatmul.f32.gmra.mxu0 %v315
      %v336 = vpop.f32.mrf.mxu0
      %v337 = vadd.f32 0.0, %v336
      %338 = vdwg.mxu0
      %v339 = vmul.f32 %v337, 0.35355338
      %v340 = vadd.f32 %v339, %v247
      %v341 = vsel %vm248, %v340, -inf
      %342 = vmax.xlane.f32.xlu0 %v341
      %v343 = vpop.xlane.xlu0 %342
      %v344 = vsub.f32 %v340, %v343
      %v345 = vmul.f32 %v344, 1.442695
      %v346 = vpow.pop %v345
      %v347 = vsel %vm248, %v346, 0.0
      %348 = vadd.xlane.f32.xlu0 %v347
      %v349 = vpop.xlane.xlu0 %348
      %v350 = vrcp.pop %v349
      %v351 = vmul.f32 %v346, %v350
      %353 = vrot.lane.b32.xlu0 %v246, 120
      %v354 = vpop.permute.xlu0 %353
      %v357 = vsel %vm248, %v351, 0
      %359 = vmatpush.msra.mxu0 0.0
      %360 = vmatpush.msra.mxu0 0.0
      %361 = vmatpush.msra.mxu0 0.0
      %362 = vmatpush.msra.mxu0 0.0
      %363 = vmatpush.msra.mxu0 0.0
      %364 = vmatpush.msra.mxu0 0.0
      %365 = vmatpush.msra.mxu0 0.0
      %366 = vmatpush.msra.mxu0 0.0
      %367 = vmatpush.msra.mxu0 0.0
      %368 = vmatpush.msra.mxu0 0.0
      %369 = vmatpush.msra.mxu0 0.0
      %370 = vmatpush.msra.mxu0 0.0
      %371 = vmatpush.msra.mxu0 0.0
      %372 = vmatpush.msra.mxu0 0.0
      %373 = vmatpush.msra.mxu0 0.0
      %374 = vmatpush.msra.mxu0 %v354
      %375 = vmatmul.f32.gmra.mxu0 %v357
      %v376 = vpop.f32.mrf.mxu0
      %v377 = vadd.f32 0.0, %v376
      %378 = vdwg.mxu0
      %379 = vrot.lane.b32.xlu0 %v244, 112
      %v380 = vpop.permute.xlu0 %379
      %381 = vrot.lane.b32.xlu0 %v245, 112
      %v382 = vpop.permute.xlu0 %381
      %v383 = vsel %vm248, %v380, 0
      %v385 = vsel %vm248, %v382, 0
      %387 = vmatpush.xpose.msra.mxu0 0.0
      %388 = vmatpush.xpose.msra.mxu0 0.0
      %389 = vmatpush.xpose.msra.mxu0 0.0
      %390 = vmatpush.xpose.msra.mxu0 0.0
      %391 = vmatpush.xpose.msra.mxu0 0.0
      %392 = vmatpush.xpose.msra.mxu0 0.0
      %393 = vmatpush.xpose.msra.mxu0 0.0
      %394 = vmatpush.xpose.msra.mxu0 0.0
      %395 = vmatpush.xpose.msra.mxu0 0.0
      %396 = vmatpush.xpose.msra.mxu0 0.0
      %397 = vmatpush.xpose.msra.mxu0 0.0
      %398 = vmatpush.xpose.msra.mxu0 0.0
      %399 = vmatpush.xpose.msra.mxu0 0.0
      %400 = vmatpush.xpose.msra.mxu0 0.0
      %401 = vmatpush.xpose.msra.mxu0 0.0
      %402 = vmatpush.xpose.msra.mxu0 %v385
      %403 = vmatmul.f32.gmra.mxu0 %v383
      %v404 = vpop.f32.mrf.mxu0
      %v405 = vadd.f32 0.0, %v404
      %406 = vdwg.mxu0
      %v407 = vmul.f32 %v405, 0.35355338
      %v408 = vadd.f32 %v407, %v247
      %v409 = vsel %vm248, %v408, -inf
      %410 = vmax.xlane.f32.xlu0 %v409
      %v411 = vpop.xlane.xlu0 %410
      %v412 = vsub.f32 %v408, %v411
      %v413 = vmul.f32 %v412, 1.442695
      %v414 = vpow.pop %v413
      %v415 = vsel %vm248, %v414, 0.0
      %416 = vadd.xlane.f32.xlu0 %v415
      %v417 = vpop.xlane.xlu0 %416
      %v418 = vrcp.pop %v417
      %v419 = vmul.f32 %v414, %v418
      %420 = vrot.lane.b32.xlu0 %v246, 112
      %v421 = vpop.permute.xlu0 %420
      %v424 = vsel %vm248, %v419, 0
      %426 = vmatpush.msra.mxu0 0.0
      %427 = vmatpush.msra.mxu0 0.0
      %428 = vmatpush.msra.mxu0 0.0
      %429 = vmatpush.msra.mxu0 0.0
      %430 = vmatpush.msra.mxu0 0.0
      %431 = vmatpush.msra.mxu0 0.0
      %432 = vmatpush.msra.mxu0 0.0
      %433 = vmatpush.msra.mxu0 0.0
      %434 = vmatpush.msra.mxu0 0.0
      %435 = vmatpush.msra.mxu0 0.0
      %436 = vmatpush.msra.mxu0 0.0
      %437 = vmatpush.msra.mxu0 0.0
      %438 = vmatpush.msra.mxu0 0.0
      %439 = vmatpush.msra.mxu0 0.0
      %440 = vmatpush.msra.mxu0 0.0
      %441 = vmatpush.msra.mxu0 %v421
      %442 = vmatmul.f32.gmra.mxu0 %v424
      %v443 = vpop.f32.mrf.mxu0
      %v444 = vadd.f32 0.0, %v443
      %445 = vdwg.mxu0
      %446 = vrot.lane.b32.xlu0 %v244, 104
      %v447 = vpop.permute.xlu0 %446
      %448 = vrot.lane.b32.xlu0 %v245, 104
      %v449 = vpop.permute.xlu0 %448
      %v450 = vsel %vm248, %v447, 0
      %v452 = vsel %vm248, %v449, 0
      %454 = vmatpush.xpose.msra.mxu0 0.0
      %455 = vmatpush.xpose.msra.mxu0 0.0
      %456 = vmatpush.xpose.msra.mxu0 0.0
      %457 = vmatpush.xpose.msra.mxu0 0.0
      %458 = vmatpush.xpose.msra.mxu0 0.0
      %459 = vmatpush.xpose.msra.mxu0 0.0
      %460 = vmatpush.xpose.msra.mxu0 0.0
      %461 = vmatpush.xpose.msra.mxu0 0.0
      %462 = vmatpush.xpose.msra.mxu0 0.0
      %463 = vmatpush.xpose.msra.mxu0 0.0
      %464 = vmatpush.xpose.msra.mxu0 0.0
      %465 = vmatpush.xpose.msra.mxu0 0.0
      %466 = vmatpush.xpose.msra.mxu0 0.0
      %467 = vmatpush.xpose.msra.mxu0 0.0
      %468 = vmatpush.xpose.msra.mxu0 0.0
      %469 = vmatpush.xpose.msra.mxu0 %v452
      %470 = vmatmul.f32.gmra.mxu0 %v450
      %v471 = vpop.f32.mrf.mxu0
      %v472 = vadd.f32 0.0, %v471
      %473 = vdwg.mxu0
      %v474 = vmul.f32 %v472, 0.35355338
      %v475 = vadd.f32 %v474, %v247
      %v476 = vsel %vm248, %v475, -inf
      %477 = vmax.xlane.f32.xlu0 %v476
      %v478 = vpop.xlane.xlu0 %477
      %v479 = vsub.f32 %v475, %v478
      %v480 = vmul.f32 %v479, 1.442695
      %v481 = vpow.pop %v480
      %v482 = vsel %vm248, %v481, 0.0
      %483 = vadd.xlane.f32.xlu0 %v482
      %v484 = vpop.xlane.xlu0 %483
      %v485 = vrcp.pop %v484
      %v486 = vmul.f32 %v481, %v485
      %487 = vrot.lane.b32.xlu0 %v246, 104
      %v488 = vpop.permute.xlu0 %487
      %v491 = vsel %vm248, %v486, 0
      %493 = vmatpush.msra.mxu0 0.0
      %494 = vmatpush.msra.mxu0 0.0
      %495 = vmatpush.msra.mxu0 0.0
      %496 = vmatpush.msra.mxu0 0.0
      %497 = vmatpush.msra.mxu0 0.0
      %498 = vmatpush.msra.mxu0 0.0
      %499 = vmatpush.msra.mxu0 0.0
      %500 = vmatpush.msra.mxu0 0.0
      %501 = vmatpush.msra.mxu0 0.0
      %502 = vmatpush.msra.mxu0 0.0
      %503 = vmatpush.msra.mxu0 0.0
      %504 = vmatpush.msra.mxu0 0.0
      %505 = vmatpush.msra.mxu0 0.0
      %506 = vmatpush.msra.mxu0 0.0
      %507 = vmatpush.msra.mxu0 0.0
      %508 = vmatpush.msra.mxu0 %v488
      %509 = vmatmul.f32.gmra.mxu0 %v491
      %v510 = vpop.f32.mrf.mxu0
      %v511 = vadd.f32 0.0, %v510
      %512 = vdwg.mxu0
      %514 = vrot.lane.b32.xlu0 %v377, 8
      %v515 = vpop.permute.xlu0 %514
      %518 = vrot.lane.b32.xlu0 %v444, 16
      %v519 = vpop.permute.xlu0 %518
      %522 = vrot.lane.b32.xlu0 %v511, 24
      %v523 = vpop.permute.xlu0 %522
      %v525 = vsel %vm248, %v309, %v515
      %vm526 = vcmask 130048
      %v527 = vsel %vm526, %v525, %v519
      %vm528 = vcmask 195584
      %v529 = vsel %vm528, %v527, %v523
      %vm530 = vcmask 261120
      %531 = vst.msk [vmem:[%s243] sm:$0xff] %vm530, %v529
      %p532 = scmp.lt.s32.totalorder %s15, 1
      %s533 = scalar_select %p532, %s15, 1
      %s534 = smul.addr %s533, 8
      %s535 = scalar_lea.vmem %s4, %s534
      // Predicated region
      $region37: #{transformer_forward.40} parent=35 // pred_check
        %p536 = pneg %p137
      $region38: #{transformer_forward.40} parent=35 // pred_check_branch
        %538 = sbr.rel (%p536) target = $region40
      $region39: #{transformer_forward.40} parent=35 // pred_region
        _
      $region40: #{transformer_forward.40} parent=35 // pred_fallthru
        _
    $region36: #{transformer_forward.40} parent=5 // pred_fallthru
      _
    %p539 = scmp.le.s32.totalorder 2, %s10
    // Predicated region
    $region41: #{transformer_forward.40} parent=5 // pred_check
      %p540 = pneg %p539
    $region42: #{transformer_forward.40} parent=5 // pred_check_branch
      %542 = sbr.rel (%p540) target = $region44
    $region43: #{transformer_forward.40} parent=5 // pred_region
      %s543 = ssub.s32 %s10, 2
      // Predicated region
      $region45: #{transformer_forward.40} parent=43 // pred_check
        %p544 = pneg %p143
      $region46: #{transformer_forward.40} parent=43 // pred_check_branch
        %546 = sbr.rel (%p544) target = $region48
      $region47: #{transformer_forward.40} parent=43 // pred_region
        %p547 = scmp.lt.s32.totalorder %s16, 1
        %s548 = scalar_select %p547, %s16, 1
        %s549 = smul.addr %s548, 8
        %s550 = scalar_lea.vmem %s4, %s549
      $region48: #{transformer_forward.40} parent=43 // pred_fallthru
        _
    $region44: #{transformer_forward.40} parent=5 // pred_fallthru
      _
  $region6: #{transformer_forward.40} parent=0 // loop_footer
    %s14 = sadd.s32 1, %s10
  $region7: #{transformer_forward.40} parent=0 // loop_footer_branch
    %9 = sbr.rel target = $region3
  $region8: #{transformer_forward.40} parent=0 // loop_exit
    _

</llo_original>
